<compile_context>
chip_gen: v7x
topology: tpu7x:2x2x1
jax: 0.10.0
libtpu: 0.0.40
codegen_flags: <defaults>
</compile_context>

<pallas_src>
import jax
import jax.numpy as jnp
from jax.experimental import pallas as pl
from jax.experimental.pallas import tpu as pltpu

HIDDEN = 4


def gru_mlp_kernel(x_ref,    # (S*B, I)      float32 input slab
                   p_ref,    # (I+H+3, 3H)   packed params:
                             #   rows 0..I-1    : W_i (gate order r|z|n)
                             #   rows I..I+H-1  : W_h (gate order r|z|n)
                             #   row  I+H       : fused input-side biases
                             #                    [b_ir+b_hr | b_iz+b_hz | b_in]
                             #   row  I+H+1     : [0 | 0 | b_hn]
                             #   row  I+H+2     : [mlp_w (H), mlp_b, 0...]
                   o_ref):   # (B, 1)
    H = HIDDEN
    B = o_ref.shape[0]
    S = x_ref.shape[0] // B
    I = x_ref.shape[1]

    p = p_ref[...]                               # single load of the packed slab
    wi = p[0:I, :]                               # (I, 3H)
    wh = p[I:I + H, :]                           # (H, 3H)
    b_i = p[I + H:I + H + 1, :]                  # (1, 3H)
    b_hn = p[I + H + 1:I + H + 2, 2 * H:3 * H]   # (1, H)
    mw = p[I + H + 2:I + H + 3, 0:H]             # (1, H)  mlp weight
    mb = p[I + H + 2:I + H + 3, H:H + 1]         # (1, 1)  mlp bias

    # Per-gate hidden weights, hoisted (static slices, off the serial chain).
    wh_r = wh[:, 0:H]                            # (H, H)
    wh_z = wh[:, H:2 * H]                        # (H, H)
    wh_n = wh[:, 2 * H:3 * H]                    # (H, H)

    # Hoisted input projection: one MXU matmul covers every timestep & gate.
    x_proj = jnp.dot(x_ref[...], wi,
                     preferred_element_type=jnp.float32) + b_i   # (S*B, 3H)

    h = jnp.zeros((B, H), jnp.float32)

    # Static unroll over the sequence; every slice below is static.
    # PyTorch GRU cell (gate order r, z, n):
    #   r  = sigmoid(W_ir x + b_ir + W_hr h + b_hr)
    #   z  = sigmoid(W_iz x + b_iz + W_hz h + b_hz)
    #   n  = tanh(W_in x + b_in + r * (W_hn h + b_hn))
    #   h' = (1 - z) * n + z * h            (== n + z * (h - n))
    for t in range(S):
        xp = x_proj[t * B:(t + 1) * B, :]                         # (B, 3H)
        xp_r = xp[:, 0:H]
        xp_z = xp[:, H:2 * H]
        xp_n = xp[:, 2 * H:3 * H]

        # Per-gate hidden projections as H broadcast-FMAs each (VPU).
        hp_r = h[:, 0:1] * wh_r[0:1, :]
        hp_z = h[:, 0:1] * wh_z[0:1, :]
        for k in range(1, H):
            hk = h[:, k:k + 1]
            hp_r = hp_r + hk * wh_r[k:k + 1, :]
            hp_z = hp_z + hk * wh_z[k:k + 1, :]

        # Issue both sigmoids (EUP) before accumulating hp_n, so the EUP FIFO
        # latency overlaps the hp_n VPU FMAs below.
        r = jax.nn.sigmoid(xp_r + hp_r)
        z = jax.nn.sigmoid(xp_z + hp_z)

        hp_n = b_hn
        for k in range(H):
            hp_n = hp_n + h[:, k:k + 1] * wh_n[k:k + 1, :]

        n = jnp.tanh(xp_n + r * hp_n)
        h = n + z * (h - n)

    # mlp: Linear(H, 1) -> VPU multiply + lane reduce (no MXU round-trip).
    o_ref[...] = jnp.sum(h * mw, axis=1, keepdims=True) + mb


def gru_mlp_forward(x, packed_params):
    """x: (seq_len, batch, input_size) f32; returns (batch, 1) f32."""
    S, B, I = x.shape
    x2d = x.reshape(S * B, I)
    vmem = pl.BlockSpec(memory_space=pltpu.MemorySpace.VMEM)
    return pl.pallas_call(
        gru_mlp_kernel,
        out_shape=jax.ShapeDtypeStruct((B, 1), jnp.float32),
        in_specs=[vmem, vmem],
        out_specs=vmem,
    )(x2d, packed_params)


def init_params(key, input_size):
    """Deterministic params, matching PyTorch nn.GRU / nn.Linear shapes."""
    h = HIDDEN
    k_gru = 1.0 / jnp.sqrt(h)
    k_mlp = 1.0 / jnp.sqrt(h)
    keys = jax.random.split(key, 6)
    # PyTorch stores weight_ih_l0 as (3H, I) with gate order (r, z, n).
    w_ih = jax.random.uniform(keys[0], (3 * h, input_size), jnp.float32,
                              -k_gru, k_gru)
    w_hh = jax.random.uniform(keys[1], (3 * h, h), jnp.float32, -k_gru, k_gru)
    b_ih = jax.random.uniform(keys[2], (3 * h,), jnp.float32, -k_gru, k_gru)
    b_hh = jax.random.uniform(keys[3], (3 * h,), jnp.float32, -k_gru, k_gru)
    # nn.Linear(4, 1): weight (1, 4), bias (1,)
    mlp_w = jax.random.uniform(keys[4], (1, h), jnp.float32, -k_mlp, k_mlp)
    mlp_b = jax.random.uniform(keys[5], (1,), jnp.float32, -k_mlp, k_mlp)
    return w_ih, w_hh, b_ih, b_hh, mlp_w, mlp_b


def pack_for_kernel(w_ih, w_hh, b_ih, b_hh, mlp_w, mlp_b):
    """Fuse everything into ONE (I+H+3, 3H) array -> single parameter DMA."""
    h = HIDDEN
    # (3H, I) -> (I, 3H) with column blocks ordered (r | z | n).
    w_i = jnp.asarray(w_ih).T                       # (I, 3H)
    w_h = jnp.asarray(w_hh).T                       # (H, 3H)
    # Input-side biases (r,z biases fused with hidden biases; n keeps only
    # b_in because b_hn sits inside r * (...)).
    b_row0 = jnp.concatenate([b_ih[0:h] + b_hh[0:h],
                              b_ih[h:2 * h] + b_hh[h:2 * h],
                              b_ih[2 * h:3 * h]])                  # (3H,)
    # Hidden-side bias: only the n-gate slot is nonzero.
    b_row1 = jnp.concatenate([jnp.zeros((2 * h,), jnp.float32),
                              b_hh[2 * h:3 * h]])                  # (3H,)
    # [mlp_w (H), mlp_b (1), zeros].
    b_row2 = jnp.concatenate([mlp_w.reshape(-1), mlp_b.reshape(-1),
                              jnp.zeros((3 * h - h - 1,), jnp.float32)])
    tail = jnp.stack([b_row0, b_row1, b_row2], axis=0)             # (3, 3H)
    packed = jnp.concatenate([w_i, w_h, tail], axis=0)             # (I+H+3, 3H)
    return packed


def reference_forward(x, w_ih, w_hh, b_ih, b_hh, mlp_w, mlp_b):
    """Pure-JAX reference replicating PyTorch GRU + Linear semantics."""
    h = HIDDEN
    S, B, _ = x.shape
    wir, wiz, win = w_ih[0:h], w_ih[h:2 * h], w_ih[2 * h:3 * h]
    whr, whz, whn = w_hh[0:h], w_hh[h:2 * h], w_hh[2 * h:3 * h]
    bir, biz, bin_ = b_ih[0:h], b_ih[h:2 * h], b_ih[2 * h:3 * h]
    bhr, bhz, bhn = b_hh[0:h], b_hh[h:2 * h], b_hh[2 * h:3 * h]
    hstate = jnp.zeros((B, h), jnp.float32)
    for t in range(S):
        xt = x[t]
        r = jax.nn.sigmoid(xt @ wir.T + bir + hstate @ whr.T + bhr)
        z = jax.nn.sigmoid(xt @ wiz.T + biz + hstate @ whz.T + bhz)
        n = jnp.tanh(xt @ win.T + bin_ + r * (hstate @ whn.T + bhn))
        hstate = (1.0 - z) * n + z * hstate
    return hstate @ mlp_w.T + mlp_b


if __name__ == "__main__":
    seq_len, batch, input_size = 8, 2, 16

    key = jax.random.PRNGKey(0)
    k_x, k_p = jax.random.split(key)
    x = jax.random.normal(k_x, (seq_len, batch, input_size), jnp.float32)

    raw_params = init_params(k_p, input_size)
    packed = pack_for_kernel(*raw_params)

    out = gru_mlp_forward(x, packed)
    out = jax.block_until_ready(out)

    ref = reference_forward(x, *raw_params)
    assert out.shape == (batch, 1)
    assert jnp.allclose(out, ref, atol=1e-5, rtol=1e-5), (out, ref)

    print("KERNEL_OK")
</pallas_src>

<mosaic_0001>
module attributes {stable_mosaic.version = 11 : i64} {
  func.func @gru_mlp_kernel(%arg0: memref<16x16xf32, #tpu.memory_space<vmem>>, %arg1: memref<23x12xf32, #tpu.memory_space<vmem>>, %arg2: memref<2x1xf32, #tpu.memory_space<vmem>>) attributes {dimension_semantics = [], scalar_prefetch = 0 : i64, scratch_operands = 0 : i64, tpu.core_type = #tpu.core_type<tc>} {
    %c0 = arith.constant 0 : index
    %c0_0 = arith.constant 0 : index
    %0 = vector.load %arg1[%c0, %c0_0] : memref<23x12xf32, #tpu.memory_space<vmem>>, vector<23x12xf32>
    %1 = vector.extract_strided_slice %0 {offsets = [0, 0], sizes = [16, 12], strides = [1, 1]} : vector<23x12xf32> to vector<16x12xf32>
    %2 = vector.extract_strided_slice %0 {offsets = [16, 0], sizes = [4, 12], strides = [1, 1]} : vector<23x12xf32> to vector<4x12xf32>
    %3 = vector.extract_strided_slice %0 {offsets = [20, 0], sizes = [1, 12], strides = [1, 1]} : vector<23x12xf32> to vector<1x12xf32>
    %4 = vector.extract_strided_slice %0 {offsets = [21, 8], sizes = [1, 4], strides = [1, 1]} : vector<23x12xf32> to vector<1x4xf32>
    %5 = vector.extract_strided_slice %0 {offsets = [22, 0], sizes = [1, 4], strides = [1, 1]} : vector<23x12xf32> to vector<1x4xf32>
    %6 = vector.extract_strided_slice %0 {offsets = [22, 4], sizes = [1, 1], strides = [1, 1]} : vector<23x12xf32> to vector<1x1xf32>
    %7 = vector.extract_strided_slice %2 {offsets = [0, 0], sizes = [4, 4], strides = [1, 1]} : vector<4x12xf32> to vector<4x4xf32>
    %8 = vector.extract_strided_slice %2 {offsets = [0, 4], sizes = [4, 4], strides = [1, 1]} : vector<4x12xf32> to vector<4x4xf32>
    %9 = vector.extract_strided_slice %2 {offsets = [0, 8], sizes = [4, 4], strides = [1, 1]} : vector<4x12xf32> to vector<4x4xf32>
    %c0_1 = arith.constant 0 : index
    %c0_2 = arith.constant 0 : index
    %10 = vector.load %arg0[%c0_1, %c0_2] : memref<16x16xf32, #tpu.memory_space<vmem>>, vector<16x16xf32>
    %cst = arith.constant dense<0.000000e+00> : vector<16x12xf32>
    %11 = tpu.matmul %10, %1, %cst {dimension_numbers = #tpu.dot_dimension_numbers<[1], [0], [0], [1], [0, 0, 1, 1], [], []>} : vector<16x16xf32>, vector<16x12xf32>, vector<16x12xf32> -> vector<16x12xf32>
    %12 = vector.broadcast %3 : vector<1x12xf32> to vector<16x12xf32>
    %13 = arith.addf %11, %12 : vector<16x12xf32>
    %cst_3 = arith.constant 0.000000e+00 : f32
    %14 = vector.broadcast %cst_3 : f32 to vector<2x4xf32>
    %15 = vector.extract_strided_slice %13 {offsets = [0, 0], sizes = [2, 12], strides = [1, 1]} : vector<16x12xf32> to vector<2x12xf32>
    %16 = vector.extract_strided_slice %15 {offsets = [0, 0], sizes = [2, 4], strides = [1, 1]} : vector<2x12xf32> to vector<2x4xf32>
    %17 = vector.extract_strided_slice %15 {offsets = [0, 4], sizes = [2, 4], strides = [1, 1]} : vector<2x12xf32> to vector<2x4xf32>
    %18 = vector.extract_strided_slice %15 {offsets = [0, 8], sizes = [2, 4], strides = [1, 1]} : vector<2x12xf32> to vector<2x4xf32>
    %19 = vector.extract_strided_slice %14 {offsets = [0, 0], sizes = [2, 1], strides = [1, 1]} : vector<2x4xf32> to vector<2x1xf32>
    %20 = vector.extract_strided_slice %7 {offsets = [0, 0], sizes = [1, 4], strides = [1, 1]} : vector<4x4xf32> to vector<1x4xf32>
    %21 = vector.broadcast %19 : vector<2x1xf32> to vector<2x4xf32>
    %22 = vector.broadcast %20 : vector<1x4xf32> to vector<2x4xf32>
    %23 = arith.mulf %21, %22 : vector<2x4xf32>
    %24 = vector.extract_strided_slice %14 {offsets = [0, 0], sizes = [2, 1], strides = [1, 1]} : vector<2x4xf32> to vector<2x1xf32>
    %25 = vector.extract_strided_slice %8 {offsets = [0, 0], sizes = [1, 4], strides = [1, 1]} : vector<4x4xf32> to vector<1x4xf32>
    %26 = vector.broadcast %24 : vector<2x1xf32> to vector<2x4xf32>
    %27 = vector.broadcast %25 : vector<1x4xf32> to vector<2x4xf32>
    %28 = arith.mulf %26, %27 : vector<2x4xf32>
    %29 = vector.extract_strided_slice %14 {offsets = [0, 1], sizes = [2, 1], strides = [1, 1]} : vector<2x4xf32> to vector<2x1xf32>
    %30 = vector.extract_strided_slice %7 {offsets = [1, 0], sizes = [1, 4], strides = [1, 1]} : vector<4x4xf32> to vector<1x4xf32>
    %31 = vector.broadcast %29 : vector<2x1xf32> to vector<2x4xf32>
    %32 = vector.broadcast %30 : vector<1x4xf32> to vector<2x4xf32>
    %33 = arith.mulf %31, %32 : vector<2x4xf32>
    %34 = arith.addf %23, %33 : vector<2x4xf32>
    %35 = vector.extract_strided_slice %8 {offsets = [1, 0], sizes = [1, 4], strides = [1, 1]} : vector<4x4xf32> to vector<1x4xf32>
    %36 = vector.broadcast %29 : vector<2x1xf32> to vector<2x4xf32>
    %37 = vector.broadcast %35 : vector<1x4xf32> to vector<2x4xf32>
    %38 = arith.mulf %36, %37 : vector<2x4xf32>
    %39 = arith.addf %28, %38 : vector<2x4xf32>
    %40 = vector.extract_strided_slice %14 {offsets = [0, 2], sizes = [2, 1], strides = [1, 1]} : vector<2x4xf32> to vector<2x1xf32>
    %41 = vector.extract_strided_slice %7 {offsets = [2, 0], sizes = [1, 4], strides = [1, 1]} : vector<4x4xf32> to vector<1x4xf32>
    %42 = vector.broadcast %40 : vector<2x1xf32> to vector<2x4xf32>
    %43 = vector.broadcast %41 : vector<1x4xf32> to vector<2x4xf32>
    %44 = arith.mulf %42, %43 : vector<2x4xf32>
    %45 = arith.addf %34, %44 : vector<2x4xf32>
    %46 = vector.extract_strided_slice %8 {offsets = [2, 0], sizes = [1, 4], strides = [1, 1]} : vector<4x4xf32> to vector<1x4xf32>
    %47 = vector.broadcast %40 : vector<2x1xf32> to vector<2x4xf32>
    %48 = vector.broadcast %46 : vector<1x4xf32> to vector<2x4xf32>
    %49 = arith.mulf %47, %48 : vector<2x4xf32>
    %50 = arith.addf %39, %49 : vector<2x4xf32>
    %51 = vector.extract_strided_slice %14 {offsets = [0, 3], sizes = [2, 1], strides = [1, 1]} : vector<2x4xf32> to vector<2x1xf32>
    %52 = vector.extract_strided_slice %7 {offsets = [3, 0], sizes = [1, 4], strides = [1, 1]} : vector<4x4xf32> to vector<1x4xf32>
    %53 = vector.broadcast %51 : vector<2x1xf32> to vector<2x4xf32>
    %54 = vector.broadcast %52 : vector<1x4xf32> to vector<2x4xf32>
    %55 = arith.mulf %53, %54 : vector<2x4xf32>
    %56 = arith.addf %45, %55 : vector<2x4xf32>
    %57 = vector.extract_strided_slice %8 {offsets = [3, 0], sizes = [1, 4], strides = [1, 1]} : vector<4x4xf32> to vector<1x4xf32>
    %58 = vector.broadcast %51 : vector<2x1xf32> to vector<2x4xf32>
    %59 = vector.broadcast %57 : vector<1x4xf32> to vector<2x4xf32>
    %60 = arith.mulf %58, %59 : vector<2x4xf32>
    %61 = arith.addf %50, %60 : vector<2x4xf32>
    %62 = arith.addf %16, %56 : vector<2x4xf32>
    %63 = arith.negf %62 : vector<2x4xf32>
    %64 = math.exp %63 : vector<2x4xf32>
    %cst_4 = arith.constant 1.000000e+00 : f32
    %65 = vector.broadcast %cst_4 : f32 to vector<2x4xf32>
    %66 = arith.addf %65, %64 : vector<2x4xf32>
    %67 = arith.divf %65, %66 : vector<2x4xf32>
    %68 = arith.addf %17, %61 : vector<2x4xf32>
    %69 = arith.negf %68 : vector<2x4xf32>
    %70 = math.exp %69 : vector<2x4xf32>
    %cst_5 = arith.constant 1.000000e+00 : f32
    %71 = vector.broadcast %cst_5 : f32 to vector<2x4xf32>
    %72 = arith.addf %71, %70 : vector<2x4xf32>
    %73 = arith.divf %71, %72 : vector<2x4xf32>
    %74 = vector.extract_strided_slice %14 {offsets = [0, 0], sizes = [2, 1], strides = [1, 1]} : vector<2x4xf32> to vector<2x1xf32>
    %75 = vector.extract_strided_slice %9 {offsets = [0, 0], sizes = [1, 4], strides = [1, 1]} : vector<4x4xf32> to vector<1x4xf32>
    %76 = vector.broadcast %74 : vector<2x1xf32> to vector<2x4xf32>
    %77 = vector.broadcast %75 : vector<1x4xf32> to vector<2x4xf32>
    %78 = arith.mulf %76, %77 : vector<2x4xf32>
    %79 = vector.broadcast %4 : vector<1x4xf32> to vector<2x4xf32>
    %80 = arith.addf %79, %78 : vector<2x4xf32>
    %81 = vector.extract_strided_slice %14 {offsets = [0, 1], sizes = [2, 1], strides = [1, 1]} : vector<2x4xf32> to vector<2x1xf32>
    %82 = vector.extract_strided_slice %9 {offsets = [1, 0], sizes = [1, 4], strides = [1, 1]} : vector<4x4xf32> to vector<1x4xf32>
    %83 = vector.broadcast %81 : vector<2x1xf32> to vector<2x4xf32>
    %84 = vector.broadcast %82 : vector<1x4xf32> to vector<2x4xf32>
    %85 = arith.mulf %83, %84 : vector<2x4xf32>
    %86 = arith.addf %80, %85 : vector<2x4xf32>
    %87 = vector.extract_strided_slice %14 {offsets = [0, 2], sizes = [2, 1], strides = [1, 1]} : vector<2x4xf32> to vector<2x1xf32>
    %88 = vector.extract_strided_slice %9 {offsets = [2, 0], sizes = [1, 4], strides = [1, 1]} : vector<4x4xf32> to vector<1x4xf32>
    %89 = vector.broadcast %87 : vector<2x1xf32> to vector<2x4xf32>
    %90 = vector.broadcast %88 : vector<1x4xf32> to vector<2x4xf32>
    %91 = arith.mulf %89, %90 : vector<2x4xf32>
    %92 = arith.addf %86, %91 : vector<2x4xf32>
    %93 = vector.extract_strided_slice %14 {offsets = [0, 3], sizes = [2, 1], strides = [1, 1]} : vector<2x4xf32> to vector<2x1xf32>
    %94 = vector.extract_strided_slice %9 {offsets = [3, 0], sizes = [1, 4], strides = [1, 1]} : vector<4x4xf32> to vector<1x4xf32>
    %95 = vector.broadcast %93 : vector<2x1xf32> to vector<2x4xf32>
    %96 = vector.broadcast %94 : vector<1x4xf32> to vector<2x4xf32>
    %97 = arith.mulf %95, %96 : vector<2x4xf32>
    %98 = arith.addf %92, %97 : vector<2x4xf32>
    %99 = arith.mulf %67, %98 : vector<2x4xf32>
    %100 = arith.addf %18, %99 : vector<2x4xf32>
    %101 = math.tanh %100 : vector<2x4xf32>
    %102 = arith.subf %14, %101 : vector<2x4xf32>
    %103 = arith.mulf %73, %102 : vector<2x4xf32>
    %104 = arith.addf %101, %103 : vector<2x4xf32>
    %105 = vector.extract_strided_slice %13 {offsets = [2, 0], sizes = [2, 12], strides = [1, 1]} : vector<16x12xf32> to vector<2x12xf32>
    %106 = vector.extract_strided_slice %105 {offsets = [0, 0], sizes = [2, 4], strides = [1, 1]} : vector<2x12xf32> to vector<2x4xf32>
    %107 = vector.extract_strided_slice %105 {offsets = [0, 4], sizes = [2, 4], strides = [1, 1]} : vector<2x12xf32> to vector<2x4xf32>
    %108 = vector.extract_strided_slice %105 {offsets = [0, 8], sizes = [2, 4], strides = [1, 1]} : vector<2x12xf32> to vector<2x4xf32>
    %109 = vector.extract_strided_slice %104 {offsets = [0, 0], sizes = [2, 1], strides = [1, 1]} : vector<2x4xf32> to vector<2x1xf32>
    %110 = vector.extract_strided_slice %7 {offsets = [0, 0], sizes = [1, 4], strides = [1, 1]} : vector<4x4xf32> to vector<1x4xf32>
    %111 = vector.broadcast %109 : vector<2x1xf32> to vector<2x4xf32>
    %112 = vector.broadcast %110 : vector<1x4xf32> to vector<2x4xf32>
    %113 = arith.mulf %111, %112 : vector<2x4xf32>
    %114 = vector.extract_strided_slice %104 {offsets = [0, 0], sizes = [2, 1], strides = [1, 1]} : vector<2x4xf32> to vector<2x1xf32>
    %115 = vector.extract_strided_slice %8 {offsets = [0, 0], sizes = [1, 4], strides = [1, 1]} : vector<4x4xf32> to vector<1x4xf32>
    %116 = vector.broadcast %114 : vector<2x1xf32> to vector<2x4xf32>
    %117 = vector.broadcast %115 : vector<1x4xf32> to vector<2x4xf32>
    %118 = arith.mulf %116, %117 : vector<2x4xf32>
    %119 = vector.extract_strided_slice %104 {offsets = [0, 1], sizes = [2, 1], strides = [1, 1]} : vector<2x4xf32> to vector<2x1xf32>
    %120 = vector.extract_strided_slice %7 {offsets = [1, 0], sizes = [1, 4], strides = [1, 1]} : vector<4x4xf32> to vector<1x4xf32>
    %121 = vector.broadcast %119 : vector<2x1xf32> to vector<2x4xf32>
    %122 = vector.broadcast %120 : vector<1x4xf32> to vector<2x4xf32>
    %123 = arith.mulf %121, %122 : vector<2x4xf32>
    %124 = arith.addf %113, %123 : vector<2x4xf32>
    %125 = vector.extract_strided_slice %8 {offsets = [1, 0], sizes = [1, 4], strides = [1, 1]} : vector<4x4xf32> to vector<1x4xf32>
    %126 = vector.broadcast %119 : vector<2x1xf32> to vector<2x4xf32>
    %127 = vector.broadcast %125 : vector<1x4xf32> to vector<2x4xf32>
    %128 = arith.mulf %126, %127 : vector<2x4xf32>
    %129 = arith.addf %118, %128 : vector<2x4xf32>
    %130 = vector.extract_strided_slice %104 {offsets = [0, 2], sizes = [2, 1], strides = [1, 1]} : vector<2x4xf32> to vector<2x1xf32>
    %131 = vector.extract_strided_slice %7 {offsets = [2, 0], sizes = [1, 4], strides = [1, 1]} : vector<4x4xf32> to vector<1x4xf32>
    %132 = vector.broadcast %130 : vector<2x1xf32> to vector<2x4xf32>
    %133 = vector.broadcast %131 : vector<1x4xf32> to vector<2x4xf32>
    %134 = arith.mulf %132, %133 : vector<2x4xf32>
    %135 = arith.addf %124, %134 : vector<2x4xf32>
    %136 = vector.extract_strided_slice %8 {offsets = [2, 0], sizes = [1, 4], strides = [1, 1]} : vector<4x4xf32> to vector<1x4xf32>
    %137 = vector.broadcast %130 : vector<2x1xf32> to vector<2x4xf32>
    %138 = vector.broadcast %136 : vector<1x4xf32> to vector<2x4xf32>
    %139 = arith.mulf %137, %138 : vector<2x4xf32>
    %140 = arith.addf %129, %139 : vector<2x4xf32>
    %141 = vector.extract_strided_slice %104 {offsets = [0, 3], sizes = [2, 1], strides = [1, 1]} : vector<2x4xf32> to vector<2x1xf32>
    %142 = vector.extract_strided_slice %7 {offsets = [3, 0], sizes = [1, 4], strides = [1, 1]} : vector<4x4xf32> to vector<1x4xf32>
    %143 = vector.broadcast %141 : vector<2x1xf32> to vector<2x4xf32>
    %144 = vector.broadcast %142 : vector<1x4xf32> to vector<2x4xf32>
    %145 = arith.mulf %143, %144 : vector<2x4xf32>
    %146 = arith.addf %135, %145 : vector<2x4xf32>
    %147 = vector.extract_strided_slice %8 {offsets = [3, 0], sizes = [1, 4], strides = [1, 1]} : vector<4x4xf32> to vector<1x4xf32>
    %148 = vector.broadcast %141 : vector<2x1xf32> to vector<2x4xf32>
    %149 = vector.broadcast %147 : vector<1x4xf32> to vector<2x4xf32>
    %150 = arith.mulf %148, %149 : vector<2x4xf32>
    %151 = arith.addf %140, %150 : vector<2x4xf32>
    %152 = arith.addf %106, %146 : vector<2x4xf32>
    %153 = arith.negf %152 : vector<2x4xf32>
    %154 = math.exp %153 : vector<2x4xf32>
    %cst_6 = arith.constant 1.000000e+00 : f32
    %155 = vector.broadcast %cst_6 : f32 to vector<2x4xf32>
    %156 = arith.addf %155, %154 : vector<2x4xf32>
    %157 = arith.divf %155, %156 : vector<2x4xf32>
    %158 = arith.addf %107, %151 : vector<2x4xf32>
    %159 = arith.negf %158 : vector<2x4xf32>
    %160 = math.exp %159 : vector<2x4xf32>
    %cst_7 = arith.constant 1.000000e+00 : f32
    %161 = vector.broadcast %cst_7 : f32 to vector<2x4xf32>
    %162 = arith.addf %161, %160 : vector<2x4xf32>
    %163 = arith.divf %161, %162 : vector<2x4xf32>
    %164 = vector.extract_strided_slice %104 {offsets = [0, 0], sizes = [2, 1], strides = [1, 1]} : vector<2x4xf32> to vector<2x1xf32>
    %165 = vector.extract_strided_slice %9 {offsets = [0, 0], sizes = [1, 4], strides = [1, 1]} : vector<4x4xf32> to vector<1x4xf32>
    %166 = vector.broadcast %164 : vector<2x1xf32> to vector<2x4xf32>
    %167 = vector.broadcast %165 : vector<1x4xf32> to vector<2x4xf32>
    %168 = arith.mulf %166, %167 : vector<2x4xf32>
    %169 = vector.broadcast %4 : vector<1x4xf32> to vector<2x4xf32>
    %170 = arith.addf %169, %168 : vector<2x4xf32>
    %171 = vector.extract_strided_slice %104 {offsets = [0, 1], sizes = [2, 1], strides = [1, 1]} : vector<2x4xf32> to vector<2x1xf32>
    %172 = vector.extract_strided_slice %9 {offsets = [1, 0], sizes = [1, 4], strides = [1, 1]} : vector<4x4xf32> to vector<1x4xf32>
    %173 = vector.broadcast %171 : vector<2x1xf32> to vector<2x4xf32>
    %174 = vector.broadcast %172 : vector<1x4xf32> to vector<2x4xf32>
    %175 = arith.mulf %173, %174 : vector<2x4xf32>
    %176 = arith.addf %170, %175 : vector<2x4xf32>
    %177 = vector.extract_strided_slice %104 {offsets = [0, 2], sizes = [2, 1], strides = [1, 1]} : vector<2x4xf32> to vector<2x1xf32>
    %178 = vector.extract_strided_slice %9 {offsets = [2, 0], sizes = [1, 4], strides = [1, 1]} : vector<4x4xf32> to vector<1x4xf32>
    %179 = vector.broadcast %177 : vector<2x1xf32> to vector<2x4xf32>
    %180 = vector.broadcast %178 : vector<1x4xf32> to vector<2x4xf32>
    %181 = arith.mulf %179, %180 : vector<2x4xf32>
    %182 = arith.addf %176, %181 : vector<2x4xf32>
    %183 = vector.extract_strided_slice %104 {offsets = [0, 3], sizes = [2, 1], strides = [1, 1]} : vector<2x4xf32> to vector<2x1xf32>
    %184 = vector.extract_strided_slice %9 {offsets = [3, 0], sizes = [1, 4], strides = [1, 1]} : vector<4x4xf32> to vector<1x4xf32>
    %185 = vector.broadcast %183 : vector<2x1xf32> to vector<2x4xf32>
    %186 = vector.broadcast %184 : vector<1x4xf32> to vector<2x4xf32>
    %187 = arith.mulf %185, %186 : vector<2x4xf32>
    %188 = arith.addf %182, %187 : vector<2x4xf32>
    %189 = arith.mulf %157, %188 : vector<2x4xf32>
    %190 = arith.addf %108, %189 : vector<2x4xf32>
    %191 = math.tanh %190 : vector<2x4xf32>
    %192 = arith.subf %104, %191 : vector<2x4xf32>
    %193 = arith.mulf %163, %192 : vector<2x4xf32>
    %194 = arith.addf %191, %193 : vector<2x4xf32>
    %195 = vector.extract_strided_slice %13 {offsets = [4, 0], sizes = [2, 12], strides = [1, 1]} : vector<16x12xf32> to vector<2x12xf32>
    %196 = vector.extract_strided_slice %195 {offsets = [0, 0], sizes = [2, 4], strides = [1, 1]} : vector<2x12xf32> to vector<2x4xf32>
    %197 = vector.extract_strided_slice %195 {offsets = [0, 4], sizes = [2, 4], strides = [1, 1]} : vector<2x12xf32> to vector<2x4xf32>
    %198 = vector.extract_strided_slice %195 {offsets = [0, 8], sizes = [2, 4], strides = [1, 1]} : vector<2x12xf32> to vector<2x4xf32>
    %199 = vector.extract_strided_slice %194 {offsets = [0, 0], sizes = [2, 1], strides = [1, 1]} : vector<2x4xf32> to vector<2x1xf32>
    %200 = vector.extract_strided_slice %7 {offsets = [0, 0], sizes = [1, 4], strides = [1, 1]} : vector<4x4xf32> to vector<1x4xf32>
    %201 = vector.broadcast %199 : vector<2x1xf32> to vector<2x4xf32>
    %202 = vector.broadcast %200 : vector<1x4xf32> to vector<2x4xf32>
    %203 = arith.mulf %201, %202 : vector<2x4xf32>
    %204 = vector.extract_strided_slice %194 {offsets = [0, 0], sizes = [2, 1], strides = [1, 1]} : vector<2x4xf32> to vector<2x1xf32>
    %205 = vector.extract_strided_slice %8 {offsets = [0, 0], sizes = [1, 4], strides = [1, 1]} : vector<4x4xf32> to vector<1x4xf32>
    %206 = vector.broadcast %204 : vector<2x1xf32> to vector<2x4xf32>
    %207 = vector.broadcast %205 : vector<1x4xf32> to vector<2x4xf32>
    %208 = arith.mulf %206, %207 : vector<2x4xf32>
    %209 = vector.extract_strided_slice %194 {offsets = [0, 1], sizes = [2, 1], strides = [1, 1]} : vector<2x4xf32> to vector<2x1xf32>
    %210 = vector.extract_strided_slice %7 {offsets = [1, 0], sizes = [1, 4], strides = [1, 1]} : vector<4x4xf32> to vector<1x4xf32>
    %211 = vector.broadcast %209 : vector<2x1xf32> to vector<2x4xf32>
    %212 = vector.broadcast %210 : vector<1x4xf32> to vector<2x4xf32>
    %213 = arith.mulf %211, %212 : vector<2x4xf32>
    %214 = arith.addf %203, %213 : vector<2x4xf32>
    %215 = vector.extract_strided_slice %8 {offsets = [1, 0], sizes = [1, 4], strides = [1, 1]} : vector<4x4xf32> to vector<1x4xf32>
    %216 = vector.broadcast %209 : vector<2x1xf32> to vector<2x4xf32>
    %217 = vector.broadcast %215 : vector<1x4xf32> to vector<2x4xf32>
    %218 = arith.mulf %216, %217 : vector<2x4xf32>
    %219 = arith.addf %208, %218 : vector<2x4xf32>
    %220 = vector.extract_strided_slice %194 {offsets = [0, 2], sizes = [2, 1], strides = [1, 1]} : vector<2x4xf32> to vector<2x1xf32>
    %221 = vector.extract_strided_slice %7 {offsets = [2, 0], sizes = [1, 4], strides = [1, 1]} : vector<4x4xf32> to vector<1x4xf32>
    %222 = vector.broadcast %220 : vector<2x1xf32> to vector<2x4xf32>
    %223 = vector.broadcast %221 : vector<1x4xf32> to vector<2x4xf32>
    %224 = arith.mulf %222, %223 : vector<2x4xf32>
    %225 = arith.addf %214, %224 : vector<2x4xf32>
    %226 = vector.extract_strided_slice %8 {offsets = [2, 0], sizes = [1, 4], strides = [1, 1]} : vector<4x4xf32> to vector<1x4xf32>
    %227 = vector.broadcast %220 : vector<2x1xf32> to vector<2x4xf32>
    %228 = vector.broadcast %226 : vector<1x4xf32> to vector<2x4xf32>
    %229 = arith.mulf %227, %228 : vector<2x4xf32>
    %230 = arith.addf %219, %229 : vector<2x4xf32>
    %231 = vector.extract_strided_slice %194 {offsets = [0, 3], sizes = [2, 1], strides = [1, 1]} : vector<2x4xf32> to vector<2x1xf32>
    %232 = vector.extract_strided_slice %7 {offsets = [3, 0], sizes = [1, 4], strides = [1, 1]} : vector<4x4xf32> to vector<1x4xf32>
    %233 = vector.broadcast %231 : vector<2x1xf32> to vector<2x4xf32>
    %234 = vector.broadcast %232 : vector<1x4xf32> to vector<2x4xf32>
    %235 = arith.mulf %233, %234 : vector<2x4xf32>
    %236 = arith.addf %225, %235 : vector<2x4xf32>
    %237 = vector.extract_strided_slice %8 {offsets = [3, 0], sizes = [1, 4], strides = [1, 1]} : vector<4x4xf32> to vector<1x4xf32>
    %238 = vector.broadcast %231 : vector<2x1xf32> to vector<2x4xf32>
    %239 = vector.broadcast %237 : vector<1x4xf32> to vector<2x4xf32>
    %240 = arith.mulf %238, %239 : vector<2x4xf32>
    %241 = arith.addf %230, %240 : vector<2x4xf32>
    %242 = arith.addf %196, %236 : vector<2x4xf32>
    %243 = arith.negf %242 : vector<2x4xf32>
    %244 = math.exp %243 : vector<2x4xf32>
    %cst_8 = arith.constant 1.000000e+00 : f32
    %245 = vector.broadcast %cst_8 : f32 to vector<2x4xf32>
    %246 = arith.addf %245, %244 : vector<2x4xf32>
    %247 = arith.divf %245, %246 : vector<2x4xf32>
    %248 = arith.addf %197, %241 : vector<2x4xf32>
    %249 = arith.negf %248 : vector<2x4xf32>
    %250 = math.exp %249 : vector<2x4xf32>
    %cst_9 = arith.constant 1.000000e+00 : f32
    %251 = vector.broadcast %cst_9 : f32 to vector<2x4xf32>
    %252 = arith.addf %251, %250 : vector<2x4xf32>
    %253 = arith.divf %251, %252 : vector<2x4xf32>
    %254 = vector.extract_strided_slice %194 {offsets = [0, 0], sizes = [2, 1], strides = [1, 1]} : vector<2x4xf32> to vector<2x1xf32>
    %255 = vector.extract_strided_slice %9 {offsets = [0, 0], sizes = [1, 4], strides = [1, 1]} : vector<4x4xf32> to vector<1x4xf32>
    %256 = vector.broadcast %254 : vector<2x1xf32> to vector<2x4xf32>
    %257 = vector.broadcast %255 : vector<1x4xf32> to vector<2x4xf32>
    %258 = arith.mulf %256, %257 : vector<2x4xf32>
    %259 = vector.broadcast %4 : vector<1x4xf32> to vector<2x4xf32>
    %260 = arith.addf %259, %258 : vector<2x4xf32>
    %261 = vector.extract_strided_slice %194 {offsets = [0, 1], sizes = [2, 1], strides = [1, 1]} : vector<2x4xf32> to vector<2x1xf32>
    %262 = vector.extract_strided_slice %9 {offsets = [1, 0], sizes = [1, 4], strides = [1, 1]} : vector<4x4xf32> to vector<1x4xf32>
    %263 = vector.broadcast %261 : vector<2x1xf32> to vector<2x4xf32>
    %264 = vector.broadcast %262 : vector<1x4xf32> to vector<2x4xf32>
    %265 = arith.mulf %263, %264 : vector<2x4xf32>
    %266 = arith.addf %260, %265 : vector<2x4xf32>
    %267 = vector.extract_strided_slice %194 {offsets = [0, 2], sizes = [2, 1], strides = [1, 1]} : vector<2x4xf32> to vector<2x1xf32>
    %268 = vector.extract_strided_slice %9 {offsets = [2, 0], sizes = [1, 4], strides = [1, 1]} : vector<4x4xf32> to vector<1x4xf32>
    %269 = vector.broadcast %267 : vector<2x1xf32> to vector<2x4xf32>
    %270 = vector.broadcast %268 : vector<1x4xf32> to vector<2x4xf32>
    %271 = arith.mulf %269, %270 : vector<2x4xf32>
    %272 = arith.addf %266, %271 : vector<2x4xf32>
    %273 = vector.extract_strided_slice %194 {offsets = [0, 3], sizes = [2, 1], strides = [1, 1]} : vector<2x4xf32> to vector<2x1xf32>
    %274 = vector.extract_strided_slice %9 {offsets = [3, 0], sizes = [1, 4], strides = [1, 1]} : vector<4x4xf32> to vector<1x4xf32>
    %275 = vector.broadcast %273 : vector<2x1xf32> to vector<2x4xf32>
    %276 = vector.broadcast %274 : vector<1x4xf32> to vector<2x4xf32>
    %277 = arith.mulf %275, %276 : vector<2x4xf32>
    %278 = arith.addf %272, %277 : vector<2x4xf32>
    %279 = arith.mulf %247, %278 : vector<2x4xf32>
    %280 = arith.addf %198, %279 : vector<2x4xf32>
    %281 = math.tanh %280 : vector<2x4xf32>
    %282 = arith.subf %194, %281 : vector<2x4xf32>
    %283 = arith.mulf %253, %282 : vector<2x4xf32>
    %284 = arith.addf %281, %283 : vector<2x4xf32>
    %285 = vector.extract_strided_slice %13 {offsets = [6, 0], sizes = [2, 12], strides = [1, 1]} : vector<16x12xf32> to vector<2x12xf32>
    %286 = vector.extract_strided_slice %285 {offsets = [0, 0], sizes = [2, 4], strides = [1, 1]} : vector<2x12xf32> to vector<2x4xf32>
    %287 = vector.extract_strided_slice %285 {offsets = [0, 4], sizes = [2, 4], strides = [1, 1]} : vector<2x12xf32> to vector<2x4xf32>
    %288 = vector.extract_strided_slice %285 {offsets = [0, 8], sizes = [2, 4], strides = [1, 1]} : vector<2x12xf32> to vector<2x4xf32>
    %289 = vector.extract_strided_slice %284 {offsets = [0, 0], sizes = [2, 1], strides = [1, 1]} : vector<2x4xf32> to vector<2x1xf32>
    %290 = vector.extract_strided_slice %7 {offsets = [0, 0], sizes = [1, 4], strides = [1, 1]} : vector<4x4xf32> to vector<1x4xf32>
    %291 = vector.broadcast %289 : vector<2x1xf32> to vector<2x4xf32>
    %292 = vector.broadcast %290 : vector<1x4xf32> to vector<2x4xf32>
    %293 = arith.mulf %291, %292 : vector<2x4xf32>
    %294 = vector.extract_strided_slice %284 {offsets = [0, 0], sizes = [2, 1], strides = [1, 1]} : vector<2x4xf32> to vector<2x1xf32>
    %295 = vector.extract_strided_slice %8 {offsets = [0, 0], sizes = [1, 4], strides = [1, 1]} : vector<4x4xf32> to vector<1x4xf32>
    %296 = vector.broadcast %294 : vector<2x1xf32> to vector<2x4xf32>
    %297 = vector.broadcast %295 : vector<1x4xf32> to vector<2x4xf32>
    %298 = arith.mulf %296, %297 : vector<2x4xf32>
    %299 = vector.extract_strided_slice %284 {offsets = [0, 1], sizes = [2, 1], strides = [1, 1]} : vector<2x4xf32> to vector<2x1xf32>
    %300 = vector.extract_strided_slice %7 {offsets = [1, 0], sizes = [1, 4], strides = [1, 1]} : vector<4x4xf32> to vector<1x4xf32>
    %301 = vector.broadcast %299 : vector<2x1xf32> to vector<2x4xf32>
    %302 = vector.broadcast %300 : vector<1x4xf32> to vector<2x4xf32>
    %303 = arith.mulf %301, %302 : vector<2x4xf32>
    %304 = arith.addf %293, %303 : vector<2x4xf32>
    %305 = vector.extract_strided_slice %8 {offsets = [1, 0], sizes = [1, 4], strides = [1, 1]} : vector<4x4xf32> to vector<1x4xf32>
    %306 = vector.broadcast %299 : vector<2x1xf32> to vector<2x4xf32>
    %307 = vector.broadcast %305 : vector<1x4xf32> to vector<2x4xf32>
    %308 = arith.mulf %306, %307 : vector<2x4xf32>
    %309 = arith.addf %298, %308 : vector<2x4xf32>
    %310 = vector.extract_strided_slice %284 {offsets = [0, 2], sizes = [2, 1], strides = [1, 1]} : vector<2x4xf32> to vector<2x1xf32>
    %311 = vector.extract_strided_slice %7 {offsets = [2, 0], sizes = [1, 4], strides = [1, 1]} : vector<4x4xf32> to vector<1x4xf32>
    %312 = vector.broadcast %310 : vector<2x1xf32> to vector<2x4xf32>
    %313 = vector.broadcast %311 : vector<1x4xf32> to vector<2x4xf32>
    %314 = arith.mulf %312, %313 : vector<2x4xf32>
    %315 = arith.addf %304, %314 : vector<2x4xf32>
    %316 = vector.extract_strided_slice %8 {offsets = [2, 0], sizes = [1, 4], strides = [1, 1]} : vector<4x4xf32> to vector<1x4xf32>
    %317 = vector.broadcast %310 : vector<2x1xf32> to vector<2x4xf32>
    %318 = vector.broadcast %316 : vector<1x4xf32> to vector<2x4xf32>
    %319 = arith.mulf %317, %318 : vector<2x4xf32>
    %320 = arith.addf %309, %319 : vector<2x4xf32>
    %321 = vector.extract_strided_slice %284 {offsets = [0, 3], sizes = [2, 1], strides = [1, 1]} : vector<2x4xf32> to vector<2x1xf32>
    %322 = vector.extract_strided_slice %7 {offsets = [3, 0], sizes = [1, 4], strides = [1, 1]} : vector<4x4xf32> to vector<1x4xf32>
    %323 = vector.broadcast %321 : vector<2x1xf32> to vector<2x4xf32>
    %324 = vector.broadcast %322 : vector<1x4xf32> to vector<2x4xf32>
    %325 = arith.mulf %323, %324 : vector<2x4xf32>
    %326 = arith.addf %315, %325 : vector<2x4xf32>
    %327 = vector.extract_strided_slice %8 {offsets = [3, 0], sizes = [1, 4], strides = [1, 1]} : vector<4x4xf32> to vector<1x4xf32>
    %328 = vector.broadcast %321 : vector<2x1xf32> to vector<2x4xf32>
    %329 = vector.broadcast %327 : vector<1x4xf32> to vector<2x4xf32>
    %330 = arith.mulf %328, %329 : vector<2x4xf32>
    %331 = arith.addf %320, %330 : vector<2x4xf32>
    %332 = arith.addf %286, %326 : vector<2x4xf32>
    %333 = arith.negf %332 : vector<2x4xf32>
    %334 = math.exp %333 : vector<2x4xf32>
    %cst_10 = arith.constant 1.000000e+00 : f32
    %335 = vector.broadcast %cst_10 : f32 to vector<2x4xf32>
    %336 = arith.addf %335, %334 : vector<2x4xf32>
    %337 = arith.divf %335, %336 : vector<2x4xf32>
    %338 = arith.addf %287, %331 : vector<2x4xf32>
    %339 = arith.negf %338 : vector<2x4xf32>
    %340 = math.exp %339 : vector<2x4xf32>
    %cst_11 = arith.constant 1.000000e+00 : f32
    %341 = vector.broadcast %cst_11 : f32 to vector<2x4xf32>
    %342 = arith.addf %341, %340 : vector<2x4xf32>
    %343 = arith.divf %341, %342 : vector<2x4xf32>
    %344 = vector.extract_strided_slice %284 {offsets = [0, 0], sizes = [2, 1], strides = [1, 1]} : vector<2x4xf32> to vector<2x1xf32>
    %345 = vector.extract_strided_slice %9 {offsets = [0, 0], sizes = [1, 4], strides = [1, 1]} : vector<4x4xf32> to vector<1x4xf32>
    %346 = vector.broadcast %344 : vector<2x1xf32> to vector<2x4xf32>
    %347 = vector.broadcast %345 : vector<1x4xf32> to vector<2x4xf32>
    %348 = arith.mulf %346, %347 : vector<2x4xf32>
    %349 = vector.broadcast %4 : vector<1x4xf32> to vector<2x4xf32>
    %350 = arith.addf %349, %348 : vector<2x4xf32>
    %351 = vector.extract_strided_slice %284 {offsets = [0, 1], sizes = [2, 1], strides = [1, 1]} : vector<2x4xf32> to vector<2x1xf32>
    %352 = vector.extract_strided_slice %9 {offsets = [1, 0], sizes = [1, 4], strides = [1, 1]} : vector<4x4xf32> to vector<1x4xf32>
    %353 = vector.broadcast %351 : vector<2x1xf32> to vector<2x4xf32>
    %354 = vector.broadcast %352 : vector<1x4xf32> to vector<2x4xf32>
    %355 = arith.mulf %353, %354 : vector<2x4xf32>
    %356 = arith.addf %350, %355 : vector<2x4xf32>
    %357 = vector.extract_strided_slice %284 {offsets = [0, 2], sizes = [2, 1], strides = [1, 1]} : vector<2x4xf32> to vector<2x1xf32>
    %358 = vector.extract_strided_slice %9 {offsets = [2, 0], sizes = [1, 4], strides = [1, 1]} : vector<4x4xf32> to vector<1x4xf32>
    %359 = vector.broadcast %357 : vector<2x1xf32> to vector<2x4xf32>
    %360 = vector.broadcast %358 : vector<1x4xf32> to vector<2x4xf32>
    %361 = arith.mulf %359, %360 : vector<2x4xf32>
    %362 = arith.addf %356, %361 : vector<2x4xf32>
    %363 = vector.extract_strided_slice %284 {offsets = [0, 3], sizes = [2, 1], strides = [1, 1]} : vector<2x4xf32> to vector<2x1xf32>
    %364 = vector.extract_strided_slice %9 {offsets = [3, 0], sizes = [1, 4], strides = [1, 1]} : vector<4x4xf32> to vector<1x4xf32>
    %365 = vector.broadcast %363 : vector<2x1xf32> to vector<2x4xf32>
    %366 = vector.broadcast %364 : vector<1x4xf32> to vector<2x4xf32>
    %367 = arith.mulf %365, %366 : vector<2x4xf32>
    %368 = arith.addf %362, %367 : vector<2x4xf32>
    %369 = arith.mulf %337, %368 : vector<2x4xf32>
    %370 = arith.addf %288, %369 : vector<2x4xf32>
    %371 = math.tanh %370 : vector<2x4xf32>
    %372 = arith.subf %284, %371 : vector<2x4xf32>
    %373 = arith.mulf %343, %372 : vector<2x4xf32>
    %374 = arith.addf %371, %373 : vector<2x4xf32>
    %375 = vector.extract_strided_slice %13 {offsets = [8, 0], sizes = [2, 12], strides = [1, 1]} : vector<16x12xf32> to vector<2x12xf32>
    %376 = vector.extract_strided_slice %375 {offsets = [0, 0], sizes = [2, 4], strides = [1, 1]} : vector<2x12xf32> to vector<2x4xf32>
    %377 = vector.extract_strided_slice %375 {offsets = [0, 4], sizes = [2, 4], strides = [1, 1]} : vector<2x12xf32> to vector<2x4xf32>
    %378 = vector.extract_strided_slice %375 {offsets = [0, 8], sizes = [2, 4], strides = [1, 1]} : vector<2x12xf32> to vector<2x4xf32>
    %379 = vector.extract_strided_slice %374 {offsets = [0, 0], sizes = [2, 1], strides = [1, 1]} : vector<2x4xf32> to vector<2x1xf32>
    %380 = vector.extract_strided_slice %7 {offsets = [0, 0], sizes = [1, 4], strides = [1, 1]} : vector<4x4xf32> to vector<1x4xf32>
    %381 = vector.broadcast %379 : vector<2x1xf32> to vector<2x4xf32>
    %382 = vector.broadcast %380 : vector<1x4xf32> to vector<2x4xf32>
    %383 = arith.mulf %381, %382 : vector<2x4xf32>
    %384 = vector.extract_strided_slice %374 {offsets = [0, 0], sizes = [2, 1], strides = [1, 1]} : vector<2x4xf32> to vector<2x1xf32>
    %385 = vector.extract_strided_slice %8 {offsets = [0, 0], sizes = [1, 4], strides = [1, 1]} : vector<4x4xf32> to vector<1x4xf32>
    %386 = vector.broadcast %384 : vector<2x1xf32> to vector<2x4xf32>
    %387 = vector.broadcast %385 : vector<1x4xf32> to vector<2x4xf32>
    %388 = arith.mulf %386, %387 : vector<2x4xf32>
    %389 = vector.extract_strided_slice %374 {offsets = [0, 1], sizes = [2, 1], strides = [1, 1]} : vector<2x4xf32> to vector<2x1xf32>
    %390 = vector.extract_strided_slice %7 {offsets = [1, 0], sizes = [1, 4], strides = [1, 1]} : vector<4x4xf32> to vector<1x4xf32>
    %391 = vector.broadcast %389 : vector<2x1xf32> to vector<2x4xf32>
    %392 = vector.broadcast %390 : vector<1x4xf32> to vector<2x4xf32>
    %393 = arith.mulf %391, %392 : vector<2x4xf32>
    %394 = arith.addf %383, %393 : vector<2x4xf32>
    %395 = vector.extract_strided_slice %8 {offsets = [1, 0], sizes = [1, 4], strides = [1, 1]} : vector<4x4xf32> to vector<1x4xf32>
    %396 = vector.broadcast %389 : vector<2x1xf32> to vector<2x4xf32>
    %397 = vector.broadcast %395 : vector<1x4xf32> to vector<2x4xf32>
    %398 = arith.mulf %396, %397 : vector<2x4xf32>
    %399 = arith.addf %388, %398 : vector<2x4xf32>
    %400 = vector.extract_strided_slice %374 {offsets = [0, 2], sizes = [2, 1], strides = [1, 1]} : vector<2x4xf32> to vector<2x1xf32>
    %401 = vector.extract_strided_slice %7 {offsets = [2, 0], sizes = [1, 4], strides = [1, 1]} : vector<4x4xf32> to vector<1x4xf32>
    %402 = vector.broadcast %400 : vector<2x1xf32> to vector<2x4xf32>
    %403 = vector.broadcast %401 : vector<1x4xf32> to vector<2x4xf32>
    %404 = arith.mulf %402, %403 : vector<2x4xf32>
    %405 = arith.addf %394, %404 : vector<2x4xf32>
    %406 = vector.extract_strided_slice %8 {offsets = [2, 0], sizes = [1, 4], strides = [1, 1]} : vector<4x4xf32> to vector<1x4xf32>
    %407 = vector.broadcast %400 : vector<2x1xf32> to vector<2x4xf32>
    %408 = vector.broadcast %406 : vector<1x4xf32> to vector<2x4xf32>
    %409 = arith.mulf %407, %408 : vector<2x4xf32>
    %410 = arith.addf %399, %409 : vector<2x4xf32>
    %411 = vector.extract_strided_slice %374 {offsets = [0, 3], sizes = [2, 1], strides = [1, 1]} : vector<2x4xf32> to vector<2x1xf32>
    %412 = vector.extract_strided_slice %7 {offsets = [3, 0], sizes = [1, 4], strides = [1, 1]} : vector<4x4xf32> to vector<1x4xf32>
    %413 = vector.broadcast %411 : vector<2x1xf32> to vector<2x4xf32>
    %414 = vector.broadcast %412 : vector<1x4xf32> to vector<2x4xf32>
    %415 = arith.mulf %413, %414 : vector<2x4xf32>
    %416 = arith.addf %405, %415 : vector<2x4xf32>
    %417 = vector.extract_strided_slice %8 {offsets = [3, 0], sizes = [1, 4], strides = [1, 1]} : vector<4x4xf32> to vector<1x4xf32>
    %418 = vector.broadcast %411 : vector<2x1xf32> to vector<2x4xf32>
    %419 = vector.broadcast %417 : vector<1x4xf32> to vector<2x4xf32>
    %420 = arith.mulf %418, %419 : vector<2x4xf32>
    %421 = arith.addf %410, %420 : vector<2x4xf32>
    %422 = arith.addf %376, %416 : vector<2x4xf32>
    %423 = arith.negf %422 : vector<2x4xf32>
    %424 = math.exp %423 : vector<2x4xf32>
    %cst_12 = arith.constant 1.000000e+00 : f32
    %425 = vector.broadcast %cst_12 : f32 to vector<2x4xf32>
    %426 = arith.addf %425, %424 : vector<2x4xf32>
    %427 = arith.divf %425, %426 : vector<2x4xf32>
    %428 = arith.addf %377, %421 : vector<2x4xf32>
    %429 = arith.negf %428 : vector<2x4xf32>
    %430 = math.exp %429 : vector<2x4xf32>
    %cst_13 = arith.constant 1.000000e+00 : f32
    %431 = vector.broadcast %cst_13 : f32 to vector<2x4xf32>
    %432 = arith.addf %431, %430 : vector<2x4xf32>
    %433 = arith.divf %431, %432 : vector<2x4xf32>
    %434 = vector.extract_strided_slice %374 {offsets = [0, 0], sizes = [2, 1], strides = [1, 1]} : vector<2x4xf32> to vector<2x1xf32>
    %435 = vector.extract_strided_slice %9 {offsets = [0, 0], sizes = [1, 4], strides = [1, 1]} : vector<4x4xf32> to vector<1x4xf32>
    %436 = vector.broadcast %434 : vector<2x1xf32> to vector<2x4xf32>
    %437 = vector.broadcast %435 : vector<1x4xf32> to vector<2x4xf32>
    %438 = arith.mulf %436, %437 : vector<2x4xf32>
    %439 = vector.broadcast %4 : vector<1x4xf32> to vector<2x4xf32>
    %440 = arith.addf %439, %438 : vector<2x4xf32>
    %441 = vector.extract_strided_slice %374 {offsets = [0, 1], sizes = [2, 1], strides = [1, 1]} : vector<2x4xf32> to vector<2x1xf32>
    %442 = vector.extract_strided_slice %9 {offsets = [1, 0], sizes = [1, 4], strides = [1, 1]} : vector<4x4xf32> to vector<1x4xf32>
    %443 = vector.broadcast %441 : vector<2x1xf32> to vector<2x4xf32>
    %444 = vector.broadcast %442 : vector<1x4xf32> to vector<2x4xf32>
    %445 = arith.mulf %443, %444 : vector<2x4xf32>
    %446 = arith.addf %440, %445 : vector<2x4xf32>
    %447 = vector.extract_strided_slice %374 {offsets = [0, 2], sizes = [2, 1], strides = [1, 1]} : vector<2x4xf32> to vector<2x1xf32>
    %448 = vector.extract_strided_slice %9 {offsets = [2, 0], sizes = [1, 4], strides = [1, 1]} : vector<4x4xf32> to vector<1x4xf32>
    %449 = vector.broadcast %447 : vector<2x1xf32> to vector<2x4xf32>
    %450 = vector.broadcast %448 : vector<1x4xf32> to vector<2x4xf32>
    %451 = arith.mulf %449, %450 : vector<2x4xf32>
    %452 = arith.addf %446, %451 : vector<2x4xf32>
    %453 = vector.extract_strided_slice %374 {offsets = [0, 3], sizes = [2, 1], strides = [1, 1]} : vector<2x4xf32> to vector<2x1xf32>
    %454 = vector.extract_strided_slice %9 {offsets = [3, 0], sizes = [1, 4], strides = [1, 1]} : vector<4x4xf32> to vector<1x4xf32>
    %455 = vector.broadcast %453 : vector<2x1xf32> to vector<2x4xf32>
    %456 = vector.broadcast %454 : vector<1x4xf32> to vector<2x4xf32>
    %457 = arith.mulf %455, %456 : vector<2x4xf32>
    %458 = arith.addf %452, %457 : vector<2x4xf32>
    %459 = arith.mulf %427, %458 : vector<2x4xf32>
    %460 = arith.addf %378, %459 : vector<2x4xf32>
    %461 = math.tanh %460 : vector<2x4xf32>
    %462 = arith.subf %374, %461 : vector<2x4xf32>
    %463 = arith.mulf %433, %462 : vector<2x4xf32>
    %464 = arith.addf %461, %463 : vector<2x4xf32>
    %465 = vector.extract_strided_slice %13 {offsets = [10, 0], sizes = [2, 12], strides = [1, 1]} : vector<16x12xf32> to vector<2x12xf32>
    %466 = vector.extract_strided_slice %465 {offsets = [0, 0], sizes = [2, 4], strides = [1, 1]} : vector<2x12xf32> to vector<2x4xf32>
    %467 = vector.extract_strided_slice %465 {offsets = [0, 4], sizes = [2, 4], strides = [1, 1]} : vector<2x12xf32> to vector<2x4xf32>
    %468 = vector.extract_strided_slice %465 {offsets = [0, 8], sizes = [2, 4], strides = [1, 1]} : vector<2x12xf32> to vector<2x4xf32>
    %469 = vector.extract_strided_slice %464 {offsets = [0, 0], sizes = [2, 1], strides = [1, 1]} : vector<2x4xf32> to vector<2x1xf32>
    %470 = vector.extract_strided_slice %7 {offsets = [0, 0], sizes = [1, 4], strides = [1, 1]} : vector<4x4xf32> to vector<1x4xf32>
    %471 = vector.broadcast %469 : vector<2x1xf32> to vector<2x4xf32>
    %472 = vector.broadcast %470 : vector<1x4xf32> to vector<2x4xf32>
    %473 = arith.mulf %471, %472 : vector<2x4xf32>
    %474 = vector.extract_strided_slice %464 {offsets = [0, 0], sizes = [2, 1], strides = [1, 1]} : vector<2x4xf32> to vector<2x1xf32>
    %475 = vector.extract_strided_slice %8 {offsets = [0, 0], sizes = [1, 4], strides = [1, 1]} : vector<4x4xf32> to vector<1x4xf32>
    %476 = vector.broadcast %474 : vector<2x1xf32> to vector<2x4xf32>
    %477 = vector.broadcast %475 : vector<1x4xf32> to vector<2x4xf32>
    %478 = arith.mulf %476, %477 : vector<2x4xf32>
    %479 = vector.extract_strided_slice %464 {offsets = [0, 1], sizes = [2, 1], strides = [1, 1]} : vector<2x4xf32> to vector<2x1xf32>
    %480 = vector.extract_strided_slice %7 {offsets = [1, 0], sizes = [1, 4], strides = [1, 1]} : vector<4x4xf32> to vector<1x4xf32>
    %481 = vector.broadcast %479 : vector<2x1xf32> to vector<2x4xf32>
    %482 = vector.broadcast %480 : vector<1x4xf32> to vector<2x4xf32>
    %483 = arith.mulf %481, %482 : vector<2x4xf32>
    %484 = arith.addf %473, %483 : vector<2x4xf32>
    %485 = vector.extract_strided_slice %8 {offsets = [1, 0], sizes = [1, 4], strides = [1, 1]} : vector<4x4xf32> to vector<1x4xf32>
    %486 = vector.broadcast %479 : vector<2x1xf32> to vector<2x4xf32>
    %487 = vector.broadcast %485 : vector<1x4xf32> to vector<2x4xf32>
    %488 = arith.mulf %486, %487 : vector<2x4xf32>
    %489 = arith.addf %478, %488 : vector<2x4xf32>
    %490 = vector.extract_strided_slice %464 {offsets = [0, 2], sizes = [2, 1], strides = [1, 1]} : vector<2x4xf32> to vector<2x1xf32>
    %491 = vector.extract_strided_slice %7 {offsets = [2, 0], sizes = [1, 4], strides = [1, 1]} : vector<4x4xf32> to vector<1x4xf32>
    %492 = vector.broadcast %490 : vector<2x1xf32> to vector<2x4xf32>
    %493 = vector.broadcast %491 : vector<1x4xf32> to vector<2x4xf32>
    %494 = arith.mulf %492, %493 : vector<2x4xf32>
    %495 = arith.addf %484, %494 : vector<2x4xf32>
    %496 = vector.extract_strided_slice %8 {offsets = [2, 0], sizes = [1, 4], strides = [1, 1]} : vector<4x4xf32> to vector<1x4xf32>
    %497 = vector.broadcast %490 : vector<2x1xf32> to vector<2x4xf32>
    %498 = vector.broadcast %496 : vector<1x4xf32> to vector<2x4xf32>
    %499 = arith.mulf %497, %498 : vector<2x4xf32>
    %500 = arith.addf %489, %499 : vector<2x4xf32>
    %501 = vector.extract_strided_slice %464 {offsets = [0, 3], sizes = [2, 1], strides = [1, 1]} : vector<2x4xf32> to vector<2x1xf32>
    %502 = vector.extract_strided_slice %7 {offsets = [3, 0], sizes = [1, 4], strides = [1, 1]} : vector<4x4xf32> to vector<1x4xf32>
    %503 = vector.broadcast %501 : vector<2x1xf32> to vector<2x4xf32>
    %504 = vector.broadcast %502 : vector<1x4xf32> to vector<2x4xf32>
    %505 = arith.mulf %503, %504 : vector<2x4xf32>
    %506 = arith.addf %495, %505 : vector<2x4xf32>
    %507 = vector.extract_strided_slice %8 {offsets = [3, 0], sizes = [1, 4], strides = [1, 1]} : vector<4x4xf32> to vector<1x4xf32>
    %508 = vector.broadcast %501 : vector<2x1xf32> to vector<2x4xf32>
    %509 = vector.broadcast %507 : vector<1x4xf32> to vector<2x4xf32>
    %510 = arith.mulf %508, %509 : vector<2x4xf32>
    %511 = arith.addf %500, %510 : vector<2x4xf32>
    %512 = arith.addf %466, %506 : vector<2x4xf32>
    %513 = arith.negf %512 : vector<2x4xf32>
    %514 = math.exp %513 : vector<2x4xf32>
    %cst_14 = arith.constant 1.000000e+00 : f32
    %515 = vector.broadcast %cst_14 : f32 to vector<2x4xf32>
    %516 = arith.addf %515, %514 : vector<2x4xf32>
    %517 = arith.divf %515, %516 : vector<2x4xf32>
    %518 = arith.addf %467, %511 : vector<2x4xf32>
    %519 = arith.negf %518 : vector<2x4xf32>
    %520 = math.exp %519 : vector<2x4xf32>
    %cst_15 = arith.constant 1.000000e+00 : f32
    %521 = vector.broadcast %cst_15 : f32 to vector<2x4xf32>
    %522 = arith.addf %521, %520 : vector<2x4xf32>
    %523 = arith.divf %521, %522 : vector<2x4xf32>
    %524 = vector.extract_strided_slice %464 {offsets = [0, 0], sizes = [2, 1], strides = [1, 1]} : vector<2x4xf32> to vector<2x1xf32>
    %525 = vector.extract_strided_slice %9 {offsets = [0, 0], sizes = [1, 4], strides = [1, 1]} : vector<4x4xf32> to vector<1x4xf32>
    %526 = vector.broadcast %524 : vector<2x1xf32> to vector<2x4xf32>
    %527 = vector.broadcast %525 : vector<1x4xf32> to vector<2x4xf32>
    %528 = arith.mulf %526, %527 : vector<2x4xf32>
    %529 = vector.broadcast %4 : vector<1x4xf32> to vector<2x4xf32>
    %530 = arith.addf %529, %528 : vector<2x4xf32>
    %531 = vector.extract_strided_slice %464 {offsets = [0, 1], sizes = [2, 1], strides = [1, 1]} : vector<2x4xf32> to vector<2x1xf32>
    %532 = vector.extract_strided_slice %9 {offsets = [1, 0], sizes = [1, 4], strides = [1, 1]} : vector<4x4xf32> to vector<1x4xf32>
    %533 = vector.broadcast %531 : vector<2x1xf32> to vector<2x4xf32>
    %534 = vector.broadcast %532 : vector<1x4xf32> to vector<2x4xf32>
    %535 = arith.mulf %533, %534 : vector<2x4xf32>
    %536 = arith.addf %530, %535 : vector<2x4xf32>
    %537 = vector.extract_strided_slice %464 {offsets = [0, 2], sizes = [2, 1], strides = [1, 1]} : vector<2x4xf32> to vector<2x1xf32>
    %538 = vector.extract_strided_slice %9 {offsets = [2, 0], sizes = [1, 4], strides = [1, 1]} : vector<4x4xf32> to vector<1x4xf32>
    %539 = vector.broadcast %537 : vector<2x1xf32> to vector<2x4xf32>
    %540 = vector.broadcast %538 : vector<1x4xf32> to vector<2x4xf32>
    %541 = arith.mulf %539, %540 : vector<2x4xf32>
    %542 = arith.addf %536, %541 : vector<2x4xf32>
    %543 = vector.extract_strided_slice %464 {offsets = [0, 3], sizes = [2, 1], strides = [1, 1]} : vector<2x4xf32> to vector<2x1xf32>
    %544 = vector.extract_strided_slice %9 {offsets = [3, 0], sizes = [1, 4], strides = [1, 1]} : vector<4x4xf32> to vector<1x4xf32>
    %545 = vector.broadcast %543 : vector<2x1xf32> to vector<2x4xf32>
    %546 = vector.broadcast %544 : vector<1x4xf32> to vector<2x4xf32>
    %547 = arith.mulf %545, %546 : vector<2x4xf32>
    %548 = arith.addf %542, %547 : vector<2x4xf32>
    %549 = arith.mulf %517, %548 : vector<2x4xf32>
    %550 = arith.addf %468, %549 : vector<2x4xf32>
    %551 = math.tanh %550 : vector<2x4xf32>
    %552 = arith.subf %464, %551 : vector<2x4xf32>
    %553 = arith.mulf %523, %552 : vector<2x4xf32>
    %554 = arith.addf %551, %553 : vector<2x4xf32>
    %555 = vector.extract_strided_slice %13 {offsets = [12, 0], sizes = [2, 12], strides = [1, 1]} : vector<16x12xf32> to vector<2x12xf32>
    %556 = vector.extract_strided_slice %555 {offsets = [0, 0], sizes = [2, 4], strides = [1, 1]} : vector<2x12xf32> to vector<2x4xf32>
    %557 = vector.extract_strided_slice %555 {offsets = [0, 4], sizes = [2, 4], strides = [1, 1]} : vector<2x12xf32> to vector<2x4xf32>
    %558 = vector.extract_strided_slice %555 {offsets = [0, 8], sizes = [2, 4], strides = [1, 1]} : vector<2x12xf32> to vector<2x4xf32>
    %559 = vector.extract_strided_slice %554 {offsets = [0, 0], sizes = [2, 1], strides = [1, 1]} : vector<2x4xf32> to vector<2x1xf32>
    %560 = vector.extract_strided_slice %7 {offsets = [0, 0], sizes = [1, 4], strides = [1, 1]} : vector<4x4xf32> to vector<1x4xf32>
    %561 = vector.broadcast %559 : vector<2x1xf32> to vector<2x4xf32>
    %562 = vector.broadcast %560 : vector<1x4xf32> to vector<2x4xf32>
    %563 = arith.mulf %561, %562 : vector<2x4xf32>
    %564 = vector.extract_strided_slice %554 {offsets = [0, 0], sizes = [2, 1], strides = [1, 1]} : vector<2x4xf32> to vector<2x1xf32>
    %565 = vector.extract_strided_slice %8 {offsets = [0, 0], sizes = [1, 4], strides = [1, 1]} : vector<4x4xf32> to vector<1x4xf32>
    %566 = vector.broadcast %564 : vector<2x1xf32> to vector<2x4xf32>
    %567 = vector.broadcast %565 : vector<1x4xf32> to vector<2x4xf32>
    %568 = arith.mulf %566, %567 : vector<2x4xf32>
    %569 = vector.extract_strided_slice %554 {offsets = [0, 1], sizes = [2, 1], strides = [1, 1]} : vector<2x4xf32> to vector<2x1xf32>
    %570 = vector.extract_strided_slice %7 {offsets = [1, 0], sizes = [1, 4], strides = [1, 1]} : vector<4x4xf32> to vector<1x4xf32>
    %571 = vector.broadcast %569 : vector<2x1xf32> to vector<2x4xf32>
    %572 = vector.broadcast %570 : vector<1x4xf32> to vector<2x4xf32>
    %573 = arith.mulf %571, %572 : vector<2x4xf32>
    %574 = arith.addf %563, %573 : vector<2x4xf32>
    %575 = vector.extract_strided_slice %8 {offsets = [1, 0], sizes = [1, 4], strides = [1, 1]} : vector<4x4xf32> to vector<1x4xf32>
    %576 = vector.broadcast %569 : vector<2x1xf32> to vector<2x4xf32>
    %577 = vector.broadcast %575 : vector<1x4xf32> to vector<2x4xf32>
    %578 = arith.mulf %576, %577 : vector<2x4xf32>
    %579 = arith.addf %568, %578 : vector<2x4xf32>
    %580 = vector.extract_strided_slice %554 {offsets = [0, 2], sizes = [2, 1], strides = [1, 1]} : vector<2x4xf32> to vector<2x1xf32>
    %581 = vector.extract_strided_slice %7 {offsets = [2, 0], sizes = [1, 4], strides = [1, 1]} : vector<4x4xf32> to vector<1x4xf32>
    %582 = vector.broadcast %580 : vector<2x1xf32> to vector<2x4xf32>
    %583 = vector.broadcast %581 : vector<1x4xf32> to vector<2x4xf32>
    %584 = arith.mulf %582, %583 : vector<2x4xf32>
    %585 = arith.addf %574, %584 : vector<2x4xf32>
    %586 = vector.extract_strided_slice %8 {offsets = [2, 0], sizes = [1, 4], strides = [1, 1]} : vector<4x4xf32> to vector<1x4xf32>
    %587 = vector.broadcast %580 : vector<2x1xf32> to vector<2x4xf32>
    %588 = vector.broadcast %586 : vector<1x4xf32> to vector<2x4xf32>
    %589 = arith.mulf %587, %588 : vector<2x4xf32>
    %590 = arith.addf %579, %589 : vector<2x4xf32>
    %591 = vector.extract_strided_slice %554 {offsets = [0, 3], sizes = [2, 1], strides = [1, 1]} : vector<2x4xf32> to vector<2x1xf32>
    %592 = vector.extract_strided_slice %7 {offsets = [3, 0], sizes = [1, 4], strides = [1, 1]} : vector<4x4xf32> to vector<1x4xf32>
    %593 = vector.broadcast %591 : vector<2x1xf32> to vector<2x4xf32>
    %594 = vector.broadcast %592 : vector<1x4xf32> to vector<2x4xf32>
    %595 = arith.mulf %593, %594 : vector<2x4xf32>
    %596 = arith.addf %585, %595 : vector<2x4xf32>
    %597 = vector.extract_strided_slice %8 {offsets = [3, 0], sizes = [1, 4], strides = [1, 1]} : vector<4x4xf32> to vector<1x4xf32>
    %598 = vector.broadcast %591 : vector<2x1xf32> to vector<2x4xf32>
    %599 = vector.broadcast %597 : vector<1x4xf32> to vector<2x4xf32>
    %600 = arith.mulf %598, %599 : vector<2x4xf32>
    %601 = arith.addf %590, %600 : vector<2x4xf32>
    %602 = arith.addf %556, %596 : vector<2x4xf32>
    %603 = arith.negf %602 : vector<2x4xf32>
    %604 = math.exp %603 : vector<2x4xf32>
    %cst_16 = arith.constant 1.000000e+00 : f32
    %605 = vector.broadcast %cst_16 : f32 to vector<2x4xf32>
    %606 = arith.addf %605, %604 : vector<2x4xf32>
    %607 = arith.divf %605, %606 : vector<2x4xf32>
    %608 = arith.addf %557, %601 : vector<2x4xf32>
    %609 = arith.negf %608 : vector<2x4xf32>
    %610 = math.exp %609 : vector<2x4xf32>
    %cst_17 = arith.constant 1.000000e+00 : f32
    %611 = vector.broadcast %cst_17 : f32 to vector<2x4xf32>
    %612 = arith.addf %611, %610 : vector<2x4xf32>
    %613 = arith.divf %611, %612 : vector<2x4xf32>
    %614 = vector.extract_strided_slice %554 {offsets = [0, 0], sizes = [2, 1], strides = [1, 1]} : vector<2x4xf32> to vector<2x1xf32>
    %615 = vector.extract_strided_slice %9 {offsets = [0, 0], sizes = [1, 4], strides = [1, 1]} : vector<4x4xf32> to vector<1x4xf32>
    %616 = vector.broadcast %614 : vector<2x1xf32> to vector<2x4xf32>
    %617 = vector.broadcast %615 : vector<1x4xf32> to vector<2x4xf32>
    %618 = arith.mulf %616, %617 : vector<2x4xf32>
    %619 = vector.broadcast %4 : vector<1x4xf32> to vector<2x4xf32>
    %620 = arith.addf %619, %618 : vector<2x4xf32>
    %621 = vector.extract_strided_slice %554 {offsets = [0, 1], sizes = [2, 1], strides = [1, 1]} : vector<2x4xf32> to vector<2x1xf32>
    %622 = vector.extract_strided_slice %9 {offsets = [1, 0], sizes = [1, 4], strides = [1, 1]} : vector<4x4xf32> to vector<1x4xf32>
    %623 = vector.broadcast %621 : vector<2x1xf32> to vector<2x4xf32>
    %624 = vector.broadcast %622 : vector<1x4xf32> to vector<2x4xf32>
    %625 = arith.mulf %623, %624 : vector<2x4xf32>
    %626 = arith.addf %620, %625 : vector<2x4xf32>
    %627 = vector.extract_strided_slice %554 {offsets = [0, 2], sizes = [2, 1], strides = [1, 1]} : vector<2x4xf32> to vector<2x1xf32>
    %628 = vector.extract_strided_slice %9 {offsets = [2, 0], sizes = [1, 4], strides = [1, 1]} : vector<4x4xf32> to vector<1x4xf32>
    %629 = vector.broadcast %627 : vector<2x1xf32> to vector<2x4xf32>
    %630 = vector.broadcast %628 : vector<1x4xf32> to vector<2x4xf32>
    %631 = arith.mulf %629, %630 : vector<2x4xf32>
    %632 = arith.addf %626, %631 : vector<2x4xf32>
    %633 = vector.extract_strided_slice %554 {offsets = [0, 3], sizes = [2, 1], strides = [1, 1]} : vector<2x4xf32> to vector<2x1xf32>
    %634 = vector.extract_strided_slice %9 {offsets = [3, 0], sizes = [1, 4], strides = [1, 1]} : vector<4x4xf32> to vector<1x4xf32>
    %635 = vector.broadcast %633 : vector<2x1xf32> to vector<2x4xf32>
    %636 = vector.broadcast %634 : vector<1x4xf32> to vector<2x4xf32>
    %637 = arith.mulf %635, %636 : vector<2x4xf32>
    %638 = arith.addf %632, %637 : vector<2x4xf32>
    %639 = arith.mulf %607, %638 : vector<2x4xf32>
    %640 = arith.addf %558, %639 : vector<2x4xf32>
    %641 = math.tanh %640 : vector<2x4xf32>
    %642 = arith.subf %554, %641 : vector<2x4xf32>
    %643 = arith.mulf %613, %642 : vector<2x4xf32>
    %644 = arith.addf %641, %643 : vector<2x4xf32>
    %645 = vector.extract_strided_slice %13 {offsets = [14, 0], sizes = [2, 12], strides = [1, 1]} : vector<16x12xf32> to vector<2x12xf32>
    %646 = vector.extract_strided_slice %645 {offsets = [0, 0], sizes = [2, 4], strides = [1, 1]} : vector<2x12xf32> to vector<2x4xf32>
    %647 = vector.extract_strided_slice %645 {offsets = [0, 4], sizes = [2, 4], strides = [1, 1]} : vector<2x12xf32> to vector<2x4xf32>
    %648 = vector.extract_strided_slice %645 {offsets = [0, 8], sizes = [2, 4], strides = [1, 1]} : vector<2x12xf32> to vector<2x4xf32>
    %649 = vector.extract_strided_slice %644 {offsets = [0, 0], sizes = [2, 1], strides = [1, 1]} : vector<2x4xf32> to vector<2x1xf32>
    %650 = vector.extract_strided_slice %7 {offsets = [0, 0], sizes = [1, 4], strides = [1, 1]} : vector<4x4xf32> to vector<1x4xf32>
    %651 = vector.broadcast %649 : vector<2x1xf32> to vector<2x4xf32>
    %652 = vector.broadcast %650 : vector<1x4xf32> to vector<2x4xf32>
    %653 = arith.mulf %651, %652 : vector<2x4xf32>
    %654 = vector.extract_strided_slice %644 {offsets = [0, 0], sizes = [2, 1], strides = [1, 1]} : vector<2x4xf32> to vector<2x1xf32>
    %655 = vector.extract_strided_slice %8 {offsets = [0, 0], sizes = [1, 4], strides = [1, 1]} : vector<4x4xf32> to vector<1x4xf32>
    %656 = vector.broadcast %654 : vector<2x1xf32> to vector<2x4xf32>
    %657 = vector.broadcast %655 : vector<1x4xf32> to vector<2x4xf32>
    %658 = arith.mulf %656, %657 : vector<2x4xf32>
    %659 = vector.extract_strided_slice %644 {offsets = [0, 1], sizes = [2, 1], strides = [1, 1]} : vector<2x4xf32> to vector<2x1xf32>
    %660 = vector.extract_strided_slice %7 {offsets = [1, 0], sizes = [1, 4], strides = [1, 1]} : vector<4x4xf32> to vector<1x4xf32>
    %661 = vector.broadcast %659 : vector<2x1xf32> to vector<2x4xf32>
    %662 = vector.broadcast %660 : vector<1x4xf32> to vector<2x4xf32>
    %663 = arith.mulf %661, %662 : vector<2x4xf32>
    %664 = arith.addf %653, %663 : vector<2x4xf32>
    %665 = vector.extract_strided_slice %8 {offsets = [1, 0], sizes = [1, 4], strides = [1, 1]} : vector<4x4xf32> to vector<1x4xf32>
    %666 = vector.broadcast %659 : vector<2x1xf32> to vector<2x4xf32>
    %667 = vector.broadcast %665 : vector<1x4xf32> to vector<2x4xf32>
    %668 = arith.mulf %666, %667 : vector<2x4xf32>
    %669 = arith.addf %658, %668 : vector<2x4xf32>
    %670 = vector.extract_strided_slice %644 {offsets = [0, 2], sizes = [2, 1], strides = [1, 1]} : vector<2x4xf32> to vector<2x1xf32>
    %671 = vector.extract_strided_slice %7 {offsets = [2, 0], sizes = [1, 4], strides = [1, 1]} : vector<4x4xf32> to vector<1x4xf32>
    %672 = vector.broadcast %670 : vector<2x1xf32> to vector<2x4xf32>
    %673 = vector.broadcast %671 : vector<1x4xf32> to vector<2x4xf32>
    %674 = arith.mulf %672, %673 : vector<2x4xf32>
    %675 = arith.addf %664, %674 : vector<2x4xf32>
    %676 = vector.extract_strided_slice %8 {offsets = [2, 0], sizes = [1, 4], strides = [1, 1]} : vector<4x4xf32> to vector<1x4xf32>
    %677 = vector.broadcast %670 : vector<2x1xf32> to vector<2x4xf32>
    %678 = vector.broadcast %676 : vector<1x4xf32> to vector<2x4xf32>
    %679 = arith.mulf %677, %678 : vector<2x4xf32>
    %680 = arith.addf %669, %679 : vector<2x4xf32>
    %681 = vector.extract_strided_slice %644 {offsets = [0, 3], sizes = [2, 1], strides = [1, 1]} : vector<2x4xf32> to vector<2x1xf32>
    %682 = vector.extract_strided_slice %7 {offsets = [3, 0], sizes = [1, 4], strides = [1, 1]} : vector<4x4xf32> to vector<1x4xf32>
    %683 = vector.broadcast %681 : vector<2x1xf32> to vector<2x4xf32>
    %684 = vector.broadcast %682 : vector<1x4xf32> to vector<2x4xf32>
    %685 = arith.mulf %683, %684 : vector<2x4xf32>
    %686 = arith.addf %675, %685 : vector<2x4xf32>
    %687 = vector.extract_strided_slice %8 {offsets = [3, 0], sizes = [1, 4], strides = [1, 1]} : vector<4x4xf32> to vector<1x4xf32>
    %688 = vector.broadcast %681 : vector<2x1xf32> to vector<2x4xf32>
    %689 = vector.broadcast %687 : vector<1x4xf32> to vector<2x4xf32>
    %690 = arith.mulf %688, %689 : vector<2x4xf32>
    %691 = arith.addf %680, %690 : vector<2x4xf32>
    %692 = arith.addf %646, %686 : vector<2x4xf32>
    %693 = arith.negf %692 : vector<2x4xf32>
    %694 = math.exp %693 : vector<2x4xf32>
    %cst_18 = arith.constant 1.000000e+00 : f32
    %695 = vector.broadcast %cst_18 : f32 to vector<2x4xf32>
    %696 = arith.addf %695, %694 : vector<2x4xf32>
    %697 = arith.divf %695, %696 : vector<2x4xf32>
    %698 = arith.addf %647, %691 : vector<2x4xf32>
    %699 = arith.negf %698 : vector<2x4xf32>
    %700 = math.exp %699 : vector<2x4xf32>
    %cst_19 = arith.constant 1.000000e+00 : f32
    %701 = vector.broadcast %cst_19 : f32 to vector<2x4xf32>
    %702 = arith.addf %701, %700 : vector<2x4xf32>
    %703 = arith.divf %701, %702 : vector<2x4xf32>
    %704 = vector.extract_strided_slice %644 {offsets = [0, 0], sizes = [2, 1], strides = [1, 1]} : vector<2x4xf32> to vector<2x1xf32>
    %705 = vector.extract_strided_slice %9 {offsets = [0, 0], sizes = [1, 4], strides = [1, 1]} : vector<4x4xf32> to vector<1x4xf32>
    %706 = vector.broadcast %704 : vector<2x1xf32> to vector<2x4xf32>
    %707 = vector.broadcast %705 : vector<1x4xf32> to vector<2x4xf32>
    %708 = arith.mulf %706, %707 : vector<2x4xf32>
    %709 = vector.broadcast %4 : vector<1x4xf32> to vector<2x4xf32>
    %710 = arith.addf %709, %708 : vector<2x4xf32>
    %711 = vector.extract_strided_slice %644 {offsets = [0, 1], sizes = [2, 1], strides = [1, 1]} : vector<2x4xf32> to vector<2x1xf32>
    %712 = vector.extract_strided_slice %9 {offsets = [1, 0], sizes = [1, 4], strides = [1, 1]} : vector<4x4xf32> to vector<1x4xf32>
    %713 = vector.broadcast %711 : vector<2x1xf32> to vector<2x4xf32>
    %714 = vector.broadcast %712 : vector<1x4xf32> to vector<2x4xf32>
    %715 = arith.mulf %713, %714 : vector<2x4xf32>
    %716 = arith.addf %710, %715 : vector<2x4xf32>
    %717 = vector.extract_strided_slice %644 {offsets = [0, 2], sizes = [2, 1], strides = [1, 1]} : vector<2x4xf32> to vector<2x1xf32>
    %718 = vector.extract_strided_slice %9 {offsets = [2, 0], sizes = [1, 4], strides = [1, 1]} : vector<4x4xf32> to vector<1x4xf32>
    %719 = vector.broadcast %717 : vector<2x1xf32> to vector<2x4xf32>
    %720 = vector.broadcast %718 : vector<1x4xf32> to vector<2x4xf32>
    %721 = arith.mulf %719, %720 : vector<2x4xf32>
    %722 = arith.addf %716, %721 : vector<2x4xf32>
    %723 = vector.extract_strided_slice %644 {offsets = [0, 3], sizes = [2, 1], strides = [1, 1]} : vector<2x4xf32> to vector<2x1xf32>
    %724 = vector.extract_strided_slice %9 {offsets = [3, 0], sizes = [1, 4], strides = [1, 1]} : vector<4x4xf32> to vector<1x4xf32>
    %725 = vector.broadcast %723 : vector<2x1xf32> to vector<2x4xf32>
    %726 = vector.broadcast %724 : vector<1x4xf32> to vector<2x4xf32>
    %727 = arith.mulf %725, %726 : vector<2x4xf32>
    %728 = arith.addf %722, %727 : vector<2x4xf32>
    %729 = arith.mulf %697, %728 : vector<2x4xf32>
    %730 = arith.addf %648, %729 : vector<2x4xf32>
    %731 = math.tanh %730 : vector<2x4xf32>
    %732 = arith.subf %644, %731 : vector<2x4xf32>
    %733 = arith.mulf %703, %732 : vector<2x4xf32>
    %734 = arith.addf %731, %733 : vector<2x4xf32>
    %735 = vector.broadcast %5 : vector<1x4xf32> to vector<2x4xf32>
    %736 = arith.mulf %734, %735 : vector<2x4xf32>
    %cst_20 = arith.constant dense<0.000000e+00> : vector<2xf32>
    %737 = vector.multi_reduction <add>, %736, %cst_20 [1] : vector<2x4xf32> to vector<2xf32>
    %738 = vector.shape_cast %737 : vector<2xf32> to vector<2x1xf32>
    %739 = vector.broadcast %6 : vector<1x1xf32> to vector<2x1xf32>
    %740 = arith.addf %738, %739 : vector<2x1xf32>
    %c0_21 = arith.constant 0 : index
    %c0_22 = arith.constant 0 : index
    %741 = vector.load %arg2[%c0_21, %c0_22] : memref<2x1xf32, #tpu.memory_space<vmem>>, vector<2x1xf32>
    tpu.vector_store %arg2[%c0_21, %c0_22], %740 {strides = array<i32>} : memref<2x1xf32, #tpu.memory_space<vmem>>, vector<2x1xf32>,
    return
  }
}

</mosaic_0001>

<llo_original>
// kernel: tpu_custom_call.1
$region0: #{tpu_custom_call.1}
  #allocation0 [shape = 'u32[]', space=smem, size = 0x4, offset = 0x4, fixed_abs, tag = 'smem constant byte address 0x4 - core index']
  #allocation1 [shape = 'u32[144,128]{1,0:T(1,128)}', space=vmem, size = 0x12000, scoped, tag = 'internal scratch']
  %s0 = inlined_call_operand.vmem [shape: f32[16,16], index: 0, kind: input, shape index: {}]
  %s1 = inlined_call_operand.vmem [shape: f32[23,12], index: 1, kind: input, shape index: {}]
  %s2 = inlined_call_operand.vmem [shape: f32[2,1], index: 2, kind: output, shape index: {}]
  %s3 = sld [smem:[#allocation0]]
  $region18: #{tpu_custom_call.1} parent=0
    _
  %s5 = ssub.s32 1, %s3
  %s6 = scalar_select 0, %s5, %s3
  // Predicated region
  $region2: #{tpu_custom_call.1} parent=0 // pred_check
    _
  $region3: #{tpu_custom_call.1} parent=0 // pred_check_branch
    %8 = sbr.rel (0) target = $region5
  $region4: #{tpu_custom_call.1} parent=0 // pred_region
    _
  $region5: #{tpu_custom_call.1} parent=0 // pred_fallthru
    _
  // Predicated region
  $region6: #{tpu_custom_call.1} parent=0 // pred_check
    _
  $region7: #{tpu_custom_call.1} parent=0 // pred_check_branch
    %10 = sbr.rel (0) target = $region9
  $region8: #{tpu_custom_call.1} parent=0 // pred_region
    _
  $region9: #{tpu_custom_call.1} parent=0 // pred_fallthru
    _
  %v11 = vld [vmem:[%s1] sm:$0xff]
  %v12 = vld [vmem:[%s1 + $0x8] sm:$0xff]
  %v13 = vld [vmem:[%s1 + $0x10] sm:$0x7f]
  %v14 = vld [vmem:[%s0] sm:$0xff]
  %v15 = vld [vmem:[%s0 + $0x8] sm:$0xff]
  %v16 = vlaneseq
  %v17 = vshrl.u32 %v16, 7
  %v18 = vsub.s32 4, %v17
  %v19 = vrot.slane %v13, %v18
  %vm20 = vcmask 130048
  %v22 = vsel %vm20, %v14, 0
  %v25 = vsel %vm20, %v15, 0
  %27 = vmatprep.subr.mxu0 0.0
  %28 = vmatpush1.msra.mxu0 %v11
  %29 = vmatprep.subr.mxu0 0.0
  %30 = vmatpush1.msra.mxu0 %v12
  %31 = vmatprep.subr.mxu0 0.0
  %32 = vmatpush1.msra.mxu0 0.0
  %33 = vmatprep.subr.mxu0 0.0
  %34 = vmatpush1.msra.mxu0 0.0
  %35 = vmatprep.subr.mxu0 0.0
  %36 = vmatpush1.msra.mxu0 0.0
  %37 = vmatprep.subr.mxu0 0.0
  %38 = vmatpush1.msra.mxu0 0.0
  %39 = vmatprep.subr.mxu0 0.0
  %40 = vmatpush1.msra.mxu0 0.0
  %41 = vmatprep.subr.mxu0 0.0
  %42 = vmatpush1.msra.mxu0 0.0
  %43 = vmatprep.subr.mxu0 0.0
  %44 = vmatpush1.msra.mxu0 0.0
  %45 = vmatprep.subr.mxu0 0.0
  %46 = vmatpush1.msra.mxu0 0.0
  %47 = vmatprep.subr.mxu0 0.0
  %48 = vmatpush1.msra.mxu0 0.0
  %49 = vmatprep.subr.mxu0 0.0
  %50 = vmatpush1.msra.mxu0 0.0
  %51 = vmatprep.subr.mxu0 0.0
  %52 = vmatpush1.msra.mxu0 0.0
  %53 = vmatprep.subr.mxu0 0.0
  %54 = vmatpush1.msra.mxu0 0.0
  %55 = vmatprep.subr.mxu0 0.0
  %56 = vmatpush1.msra.mxu0 0.0
  %57 = vmatprep.subr.mxu0 0.0
  %58 = vmatpush1.msra.mxu0 0.0
  %59 = vmatprep.subr.mxu0 0.0
  %60 = vmatpush1.msra.mxu0 0.0
  %61 = vmatprep.subr.mxu0 0.0
  %62 = vmatpush1.msra.mxu0 0.0
  %63 = vmatprep.subr.mxu0 0.0
  %64 = vmatpush1.msra.mxu0 0.0
  %65 = vmatprep.subr.mxu0 0.0
  %66 = vmatpush1.msra.mxu0 0.0
  %67 = vmatprep.subr.mxu0 0.0
  %68 = vmatpush1.msra.mxu0 0.0
  %69 = vmatprep.subr.mxu0 0.0
  %70 = vmatpush1.msra.mxu0 0.0
  %71 = vmatprep.subr.mxu0 0.0
  %72 = vmatpush1.msra.mxu0 0.0
  %73 = vmatprep.subr.mxu0 0.0
  %74 = vmatpush1.msra.mxu0 0.0
  %75 = vmatprep.subr.mxu0 0.0
  %76 = vmatpush1.msra.mxu0 0.0
  %77 = vmatprep.subr.mxu0 0.0
  %78 = vmatpush1.msra.mxu0 0.0
  %79 = vmatprep.subr.mxu0 0.0
  %80 = vmatpush1.msra.mxu0 0.0
  %81 = vmatprep.subr.mxu0 0.0
  %82 = vmatpush1.msra.mxu0 0.0
  %83 = vmatprep.subr.mxu0 0.0
  %84 = vmatpush1.msra.mxu0 0.0
  %85 = vmatprep.subr.mxu0 0.0
  %86 = vmatpush1.msra.mxu0 0.0
  %87 = vmatprep.subr.mxu0 0.0
  %88 = vmatpush1.msra.mxu0 0.0
  %89 = vmatprep.subr.mxu0 0.0
  %90 = vmatpush1.msra.mxu0 0.0
  %91 = vmatprep.mubr.f32.mxu0 0.0
  %92 = vmatmul.mubr.f32.gmra.mrb[0].mxu0 %v22
  %v93 = vpop.f32.mrb[0].mxu0
  %v94 = vadd.f32 %v19, %v93
  %v95 = vpop.f32.mrb[0].mxu0
  %96 = vmatprep.mubr.f32.mxu0 0.0
  %97 = vmatmul.mubr.f32.gmra.mrb[0].mxu0 %v25
  %v98 = vpop.f32.mrb[0].mxu0
  %v99 = vadd.f32 %v19, %v98
  %v100 = vpop.f32.mrb[0].mxu0
  %101 = vdwg.mxu0
  %v102 = vlaneseq
  %v103 = vshrl.u32 %v102, 7
  %v104 = vsub.s32 0, %v103
  %v105 = vrot.slane %v13, %v104
  %v106 = vmul.f32 %v105, 0.0
  %v107 = vlaneseq
  %v108 = vshrl.u32 %v107, 7
  %v109 = vsub.s32 1, %v108
  %v110 = vrot.slane %v13, %v109
  %v111 = vmul.f32 %v110, 0.0
  %v112 = vadd.f32 %v106, %v111
  %v113 = vlaneseq
  %v114 = vshrl.u32 %v113, 7
  %v115 = vsub.s32 2, %v114
  %v116 = vrot.slane %v13, %v115
  %v117 = vmul.f32 %v116, 0.0
  %v118 = vadd.f32 %v112, %v117
  %v119 = vlaneseq
  %v120 = vshrl.u32 %v119, 7
  %v121 = vsub.s32 3, %v120
  %v122 = vrot.slane %v13, %v121
  %v123 = vmul.f32 %v122, 0.0
  %v124 = vadd.f32 %v118, %v123
  %v125 = vadd.f32 %v94, %v124
  %v126 = vxor.u32 %v125, 2147483648
  %v127 = vmul.f32 %v126, 1.442695
  %v128 = vpow.pop %v127
  %v129 = vadd.f32 %v128, 1.0
  %v130 = vrcp.pop %v129
  %v131 = vmul.f32 1.0, %v130
  %v132 = vlaneseq
  %v133 = vshrl.u32 %v132, 7
  %v134 = vsub.s32 5, %v133
  %v135 = vrot.slane %v13, %v134
  %v136 = vadd.f32 %v135, %v106
  %v137 = vadd.f32 %v136, %v111
  %v138 = vadd.f32 %v137, %v117
  %v139 = vadd.f32 %v138, %v123
  %141 = vrot.lane.b32.xlu0 %v139, 120
  %v142 = vpop.permute.xlu0 %141
  %v144 = vmul.f32 %v131, %v142
  %146 = vrot.lane.b32.xlu0 %v144, 8
  %v147 = vpop.permute.xlu0 %146
  %v149 = vadd.f32 %v94, %v147
  %v150 = vtanh.pop %v149
  %v151 = vsub.f32 0.0, %v150
  %153 = vrot.lane.b32.xlu0 %v151, 124
  %v154 = vpop.permute.xlu0 %153
  %v156 = vmul.f32 %v131, %v154
  %158 = vrot.lane.b32.xlu0 %v156, 4
  %v159 = vpop.permute.xlu0 %158
  %v161 = vadd.f32 %v150, %v159
  %163 = vset.pattern.permute.xlu0 8
  %164 = vperm.xlu0 %163, %v161
  %v165 = vpop.permute.xlu0 %164
  %v167 = vmul.f32 %v165, %v105
  %168 = vset.pattern.permute.xlu0 9
  %169 = vperm.xlu0 %168, %v161
  %v170 = vpop.permute.xlu0 %169
  %v172 = vmul.f32 %v170, %v110
  %v173 = vadd.f32 %v167, %v172
  %174 = vset.pattern.permute.xlu0 10
  %175 = vperm.xlu0 %174, %v161
  %v176 = vpop.permute.xlu0 %175
  %v178 = vmul.f32 %v176, %v116
  %v179 = vadd.f32 %v173, %v178
  %180 = vset.pattern.permute.xlu0 11
  %181 = vperm.xlu0 %180, %v161
  %v182 = vpop.permute.xlu0 %181
  %v184 = vmul.f32 %v182, %v122
  %v185 = vadd.f32 %v179, %v184
  %v187 = vrot.slane %v185, 6
  %v189 = vadd.f32 %v94, %v187
  %v190 = vxor.u32 %v189, 2147483648
  %v191 = vmul.f32 %v190, 1.442695
  %v192 = vpow.pop %v191
  %v193 = vadd.f32 %v192, 1.0
  %v194 = vrcp.pop %v193
  %v195 = vmul.f32 1.0, %v194
  %v196 = vadd.f32 %v135, %v167
  %v197 = vadd.f32 %v196, %v172
  %v198 = vadd.f32 %v197, %v178
  %v199 = vadd.f32 %v198, %v184
  %v201 = vrot.slane %v199, 6
  %202 = vrot.lane.b32.xlu0 %v201, 120
  %v203 = vpop.permute.xlu0 %202
  %v205 = vmul.f32 %v195, %v203
  %207 = vrot.lane.b32.xlu0 %v205, 8
  %v208 = vpop.permute.xlu0 %207
  %v210 = vadd.f32 %v94, %v208
  %v211 = vtanh.pop %v210
  %v213 = vrot.slane %v211, 2
  %v215 = vsub.f32 %v161, %v213
  %v217 = vrot.slane %v215, 6
  %218 = vrot.lane.b32.xlu0 %v217, 124
  %v219 = vpop.permute.xlu0 %218
  %v221 = vmul.f32 %v195, %v219
  %223 = vrot.lane.b32.xlu0 %v221, 4
  %v224 = vpop.permute.xlu0 %223
  %v226 = vadd.f32 %v211, %v224
  %228 = vset.pattern.permute.xlu0 8
  %229 = vperm.xlu0 %228, %v226
  %v230 = vpop.permute.xlu0 %229
  %v232 = vmul.f32 %v230, %v105
  %233 = vset.pattern.permute.xlu0 9
  %234 = vperm.xlu0 %233, %v226
  %v235 = vpop.permute.xlu0 %234
  %v237 = vmul.f32 %v235, %v110
  %v238 = vadd.f32 %v232, %v237
  %239 = vset.pattern.permute.xlu0 10
  %240 = vperm.xlu0 %239, %v226
  %v241 = vpop.permute.xlu0 %240
  %v243 = vmul.f32 %v241, %v116
  %v244 = vadd.f32 %v238, %v243
  %245 = vset.pattern.permute.xlu0 11
  %246 = vperm.xlu0 %245, %v226
  %v247 = vpop.permute.xlu0 %246
  %v249 = vmul.f32 %v247, %v122
  %v250 = vadd.f32 %v244, %v249
  %v252 = vrot.slane %v250, 6
  %v254 = vadd.f32 %v94, %v252
  %v255 = vxor.u32 %v254, 2147483648
  %v256 = vmul.f32 %v255, 1.442695
  %v257 = vpow.pop %v256
  %v258 = vadd.f32 %v257, 1.0
  %v259 = vrcp.pop %v258
  %v260 = vmul.f32 1.0, %v259
  %v261 = vadd.f32 %v135, %v232
  %v262 = vadd.f32 %v261, %v237
  %v263 = vadd.f32 %v262, %v243
  %v264 = vadd.f32 %v263, %v249
  %v266 = vrot.slane %v264, 6
  %267 = vrot.lane.b32.xlu0 %v266, 120
  %v268 = vpop.permute.xlu0 %267
  %v270 = vmul.f32 %v260, %v268
  %272 = vrot.lane.b32.xlu0 %v270, 8
  %v273 = vpop.permute.xlu0 %272
  %v275 = vadd.f32 %v94, %v273
  %v276 = vtanh.pop %v275
  %v278 = vrot.slane %v276, 2
  %v280 = vsub.f32 %v226, %v278
  %v282 = vrot.slane %v280, 6
  %283 = vrot.lane.b32.xlu0 %v282, 124
  %v284 = vpop.permute.xlu0 %283
  %v286 = vmul.f32 %v260, %v284
  %288 = vrot.lane.b32.xlu0 %v286, 4
  %v289 = vpop.permute.xlu0 %288
  %v291 = vadd.f32 %v276, %v289
  %293 = vset.pattern.permute.xlu0 8
  %294 = vperm.xlu0 %293, %v291
  %v295 = vpop.permute.xlu0 %294
  %v297 = vmul.f32 %v295, %v105
  %298 = vset.pattern.permute.xlu0 9
  %299 = vperm.xlu0 %298, %v291
  %v300 = vpop.permute.xlu0 %299
  %v302 = vmul.f32 %v300, %v110
  %v303 = vadd.f32 %v297, %v302
  %304 = vset.pattern.permute.xlu0 10
  %305 = vperm.xlu0 %304, %v291
  %v306 = vpop.permute.xlu0 %305
  %v308 = vmul.f32 %v306, %v116
  %v309 = vadd.f32 %v303, %v308
  %310 = vset.pattern.permute.xlu0 11
  %311 = vperm.xlu0 %310, %v291
  %v312 = vpop.permute.xlu0 %311
  %v314 = vmul.f32 %v312, %v122
  %v315 = vadd.f32 %v309, %v314
  %v317 = vrot.slane %v315, 6
  %v319 = vadd.f32 %v94, %v317
  %v320 = vxor.u32 %v319, 2147483648
  %v321 = vmul.f32 %v320, 1.442695
  %v322 = vpow.pop %v321
  %v323 = vadd.f32 %v322, 1.0
  %v324 = vrcp.pop %v323
  %v325 = vmul.f32 1.0, %v324
  %v326 = vadd.f32 %v135, %v297
  %v327 = vadd.f32 %v326, %v302
  %v328 = vadd.f32 %v327, %v308
  %v329 = vadd.f32 %v328, %v314
  %v331 = vrot.slane %v329, 6
  %332 = vrot.lane.b32.xlu0 %v331, 120
  %v333 = vpop.permute.xlu0 %332
  %v335 = vmul.f32 %v325, %v333
  %337 = vrot.lane.b32.xlu0 %v335, 8
  %v338 = vpop.permute.xlu0 %337
  %v340 = vadd.f32 %v94, %v338
  %v341 = vtanh.pop %v340
  %v343 = vrot.slane %v341, 2
  %v345 = vsub.f32 %v291, %v343
  %v347 = vrot.slane %v345, 6
  %348 = vrot.lane.b32.xlu0 %v347, 124
  %v349 = vpop.permute.xlu0 %348
  %v351 = vmul.f32 %v325, %v349
  %353 = vrot.lane.b32.xlu0 %v351, 4
  %v354 = vpop.permute.xlu0 %353
  %v356 = vadd.f32 %v341, %v354
  %358 = vset.pattern.permute.xlu0 8
  %359 = vperm.xlu0 %358, %v356
  %v360 = vpop.permute.xlu0 %359
  %v362 = vmul.f32 %v360, %v105
  %363 = vset.pattern.permute.xlu0 9
  %364 = vperm.xlu0 %363, %v356
  %v365 = vpop.permute.xlu0 %364
  %v367 = vmul.f32 %v365, %v110
  %v368 = vadd.f32 %v362, %v367
  %369 = vset.pattern.permute.xlu0 10
  %370 = vperm.xlu0 %369, %v356
  %v371 = vpop.permute.xlu0 %370
  %v373 = vmul.f32 %v371, %v116
  %v374 = vadd.f32 %v368, %v373
  %375 = vset.pattern.permute.xlu0 11
  %376 = vperm.xlu0 %375, %v356
  %v377 = vpop.permute.xlu0 %376
  %v379 = vmul.f32 %v377, %v122
  %v380 = vadd.f32 %v374, %v379
  %v382 = vrot.slane %v380, 6
  %v384 = vadd.f32 %v99, %v382
  %v385 = vxor.u32 %v384, 2147483648
  %v386 = vmul.f32 %v385, 1.442695
  %v387 = vpow.pop %v386
  %v388 = vadd.f32 %v387, 1.0
  %v389 = vrcp.pop %v388
  %v390 = vmul.f32 1.0, %v389
  %v391 = vadd.f32 %v135, %v362
  %v392 = vadd.f32 %v391, %v367
  %v393 = vadd.f32 %v392, %v373
  %v394 = vadd.f32 %v393, %v379
  %v396 = vrot.slane %v394, 6
  %397 = vrot.lane.b32.xlu0 %v396, 120
  %v398 = vpop.permute.xlu0 %397
  %v400 = vmul.f32 %v390, %v398
  %402 = vrot.lane.b32.xlu0 %v400, 8
  %v403 = vpop.permute.xlu0 %402
  %v405 = vadd.f32 %v99, %v403
  %v406 = vtanh.pop %v405
  %v408 = vrot.slane %v406, 2
  %v410 = vsub.f32 %v356, %v408
  %v412 = vrot.slane %v410, 6
  %413 = vrot.lane.b32.xlu0 %v412, 124
  %v414 = vpop.permute.xlu0 %413
  %v416 = vmul.f32 %v390, %v414
  %418 = vrot.lane.b32.xlu0 %v416, 4
  %v419 = vpop.permute.xlu0 %418
  %v421 = vadd.f32 %v406, %v419
  %423 = vset.pattern.permute.xlu0 8
  %424 = vperm.xlu0 %423, %v421
  %v425 = vpop.permute.xlu0 %424
  %v427 = vmul.f32 %v425, %v105
  %428 = vset.pattern.permute.xlu0 9
  %429 = vperm.xlu0 %428, %v421
  %v430 = vpop.permute.xlu0 %429
  %v432 = vmul.f32 %v430, %v110
  %v433 = vadd.f32 %v427, %v432
  %434 = vset.pattern.permute.xlu0 10
  %435 = vperm.xlu0 %434, %v421
  %v436 = vpop.permute.xlu0 %435
  %v438 = vmul.f32 %v436, %v116
  %v439 = vadd.f32 %v433, %v438
  %440 = vset.pattern.permute.xlu0 11
  %441 = vperm.xlu0 %440, %v421
  %v442 = vpop.permute.xlu0 %441
  %v444 = vmul.f32 %v442, %v122
  %v445 = vadd.f32 %v439, %v444
  %v447 = vrot.slane %v445, 6
  %v449 = vadd.f32 %v99, %v447
  %v450 = vxor.u32 %v449, 2147483648
  %v451 = vmul.f32 %v450, 1.442695
  %v452 = vpow.pop %v451
  %v453 = vadd.f32 %v452, 1.0
  %v454 = vrcp.pop %v453
  %v455 = vmul.f32 1.0, %v454
  %v456 = vadd.f32 %v135, %v427
  %v457 = vadd.f32 %v456, %v432
  %v458 = vadd.f32 %v457, %v438
  %v459 = vadd.f32 %v458, %v444
  %v461 = vrot.slane %v459, 6
  %462 = vrot.lane.b32.xlu0 %v461, 120
  %v463 = vpop.permute.xlu0 %462
  %v465 = vmul.f32 %v455, %v463
  %467 = vrot.lane.b32.xlu0 %v465, 8
  %v468 = vpop.permute.xlu0 %467
  %v470 = vadd.f32 %v99, %v468
  %v471 = vtanh.pop %v470
  %v473 = vrot.slane %v471, 2
  %v475 = vsub.f32 %v421, %v473
  %v477 = vrot.slane %v475, 6
  %478 = vrot.lane.b32.xlu0 %v477, 124
  %v479 = vpop.permute.xlu0 %478
  %v481 = vmul.f32 %v455, %v479
  %483 = vrot.lane.b32.xlu0 %v481, 4
  %v484 = vpop.permute.xlu0 %483
  %v486 = vadd.f32 %v471, %v484
  %488 = vset.pattern.permute.xlu0 8
  %489 = vperm.xlu0 %488, %v486
  %v490 = vpop.permute.xlu0 %489
  %v492 = vmul.f32 %v490, %v105
  %493 = vset.pattern.permute.xlu0 9
  %494 = vperm.xlu0 %493, %v486
  %v495 = vpop.permute.xlu0 %494
  %v497 = vmul.f32 %v495, %v110
  %v498 = vadd.f32 %v492, %v497
  %499 = vset.pattern.permute.xlu0 10
  %500 = vperm.xlu0 %499, %v486
  %v501 = vpop.permute.xlu0 %500
  %v503 = vmul.f32 %v501, %v116
  %v504 = vadd.f32 %v498, %v503
  %505 = vset.pattern.permute.xlu0 11
  %506 = vperm.xlu0 %505, %v486
  %v507 = vpop.permute.xlu0 %506
  %v509 = vmul.f32 %v507, %v122
  %v510 = vadd.f32 %v504, %v509
  %v512 = vrot.slane %v510, 6
  %v514 = vadd.f32 %v99, %v512
  %v515 = vxor.u32 %v514, 2147483648
  %v516 = vmul.f32 %v515, 1.442695
  %v517 = vpow.pop %v516
  %v518 = vadd.f32 %v517, 1.0
  %v519 = vrcp.pop %v518
  %v520 = vmul.f32 1.0, %v519
  %v521 = vadd.f32 %v135, %v492
  %v522 = vadd.f32 %v521, %v497
  %v523 = vadd.f32 %v522, %v503
  %v524 = vadd.f32 %v523, %v509
  %v526 = vrot.slane %v524, 6
  %527 = vrot.lane.b32.xlu0 %v526, 120
  %v528 = vpop.permute.xlu0 %527
  %v530 = vmul.f32 %v520, %v528
  %532 = vrot.lane.b32.xlu0 %v530, 8
  %v533 = vpop.permute.xlu0 %532
  %v535 = vadd.f32 %v99, %v533
  %v536 = vtanh.pop %v535
  %v538 = vrot.slane %v536, 2
  %v540 = vsub.f32 %v486, %v538
  %v542 = vrot.slane %v540, 6
  %543 = vrot.lane.b32.xlu0 %v542, 124
  %v544 = vpop.permute.xlu0 %543
  %v546 = vmul.f32 %v520, %v544
  %548 = vrot.lane.b32.xlu0 %v546, 4
  %v549 = vpop.permute.xlu0 %548
  %v551 = vadd.f32 %v536, %v549
  %553 = vset.pattern.permute.xlu0 8
  %554 = vperm.xlu0 %553, %v551
  %v555 = vpop.permute.xlu0 %554
  %v557 = vmul.f32 %v555, %v105
  %558 = vset.pattern.permute.xlu0 9
  %559 = vperm.xlu0 %558, %v551
  %v560 = vpop.permute.xlu0 %559
  %v562 = vmul.f32 %v560, %v110
  %v563 = vadd.f32 %v557, %v562
  %564 = vset.pattern.permute.xlu0 10
  %565 = vperm.xlu0 %564, %v551
  %v566 = vpop.permute.xlu0 %565
  %v568 = vmul.f32 %v566, %v116
  %v569 = vadd.f32 %v563, %v568
  %570 = vset.pattern.permute.xlu0 11
  %571 = vperm.xlu0 %570, %v551
  %v572 = vpop.permute.xlu0 %571
  %v574 = vmul.f32 %v572, %v122
  %v575 = vadd.f32 %v569, %v574
  %v577 = vrot.slane %v575, 6
  %v579 = vadd.f32 %v99, %v577
  %v580 = vxor.u32 %v579, 2147483648
  %v581 = vmul.f32 %v580, 1.442695
  %v582 = vpow.pop %v581
  %v583 = vadd.f32 %v582, 1.0
  %v584 = vrcp.pop %v583
  %v585 = vmul.f32 1.0, %v584
  %v586 = vadd.f32 %v135, %v557
  %v587 = vadd.f32 %v586, %v562
  %v588 = vadd.f32 %v587, %v568
  %v589 = vadd.f32 %v588, %v574
  %v591 = vrot.slane %v589, 6
  %592 = vrot.lane.b32.xlu0 %v591, 120
  %v593 = vpop.permute.xlu0 %592
  %v595 = vmul.f32 %v585, %v593
  %597 = vrot.lane.b32.xlu0 %v595, 8
  %v598 = vpop.permute.xlu0 %597
  %v600 = vadd.f32 %v99, %v598
  %v601 = vtanh.pop %v600
  %v603 = vrot.slane %v601, 2
  %v605 = vsub.f32 %v551, %v603
  %v607 = vrot.slane %v605, 6
  %608 = vrot.lane.b32.xlu0 %v607, 124
  %v609 = vpop.permute.xlu0 %608
  %v611 = vmul.f32 %v585, %v609
  %613 = vrot.lane.b32.xlu0 %v611, 4
  %v614 = vpop.permute.xlu0 %613
  %v616 = vadd.f32 %v601, %v614
  %v617 = vlaneseq
  %v618 = vshrl.u32 %v617, 7
  %v619 = vsub.s32 6, %v618
  %v620 = vrot.slane %v13, %v619
  %622 = vrot.lane.b32.xlu0 %v620, 8
  %v623 = vpop.permute.xlu0 %622
  %v625 = vmul.f32 %v616, %v623
  %627 = vrot.lane.b32.xlu0 %v625, 120
  %v628 = vpop.permute.xlu0 %627
  %vm630 = vcmask 31750
  %v631 = vsel %vm630, %v628, 0.0
  %632 = vadd.xlane.f32.xlu0 %v631
  %v633 = vpop.xlane.xlu0 %632
  %v634 = vadd.f32 %v633, %v620
  %636 = vrot.lane.b32.xlu0 %v634, 124
  %v637 = vpop.permute.xlu0 %636
  %vm639 = vcmask 7174
  %640 = vst.msk [vmem:[%s2 - $0x6] sm:$0xc0] %vm639, %v637
  // Predicated region
  $region10: #{tpu_custom_call.1} parent=0 // pred_check
    _
  $region11: #{tpu_custom_call.1} parent=0 // pred_check_branch
    %642 = sbr.rel (0) target = $region13
  $region12: #{tpu_custom_call.1} parent=0 // pred_region
    _
  $region13: #{tpu_custom_call.1} parent=0 // pred_fallthru
    _
  // Predicated region
  $region14: #{tpu_custom_call.1} parent=0 // pred_check
    _
  $region15: #{tpu_custom_call.1} parent=0 // pred_check_branch
    %644 = sbr.rel (0) target = $region17
  $region16: #{tpu_custom_call.1} parent=0 // pred_region
    _
  $region17: #{tpu_custom_call.1} parent=0 // pred_fallthru
    _

</llo_original>
